<compile_context>
chip_gen: v7x
topology: tpu7x:2x2x1
jax: 0.10.0
libtpu: 0.0.40
codegen_flags: <defaults>
</compile_context>

<pallas_src>
import functools

import jax
import jax.numpy as jnp
import numpy as np
from jax.experimental import pallas as pl
from jax.experimental.pallas import tpu as pltpu


def get_configs():
    level_config = {
        'level1': [4, 8, 12, 16],
        'level2': [4, 8, 12, 16, 20, 24, 28, 32],
        'level3': [4 * i for i in range(1, 17)],
    }
    model_config = {}
    for i in range(0, 7):
        model_config[i] = level_config['level1']
    for i in range(7, 13):
        model_config[i] = level_config['level2']
    for i in range(13, 20):
        model_config[i] = level_config['level3']
    return model_config


# 3x3 taps in (dy, dx) lexicographic order, expressed as offsets (oy, ox).
_TAPS = tuple((oy, ox) for oy in (-1, 0, 1) for ox in (-1, 0, 1))


# ---------------------------------------------------------------------------
# static tap plans + 0/1 border masks (bf16, per-tile -- identical every tile)
# ---------------------------------------------------------------------------

def _tap_plan_s1(Wg):
    """stride-1 3x3/pad-1 conv, input as one (Cin, R) plane.
    Per tap: (flat roll offset k so the tap reads column r+k, needs_border_mask)."""
    return tuple((oy * Wg + ox, (oy, ox) != (0, 0)) for oy, ox in _TAPS)


def _tap_plan_s2(Wo):
    """stride-2 3x3/pad-1 conv from the 4 polyphase planes of x (even/odd rows x
    even/odd cols, each (Cin, R) on the output grid).
    Per tap: (plane index in [EE, EO, OE, OO], flat roll offset, needs_border_mask)."""
    plan = []
    for oy, ox in _TAPS:
        plane = (0 if oy == 0 else 2) + (0 if ox == 0 else 1)
        k = (-Wo if oy == -1 else 0) + (-1 if ox == -1 else 0)
        plan.append((plane, k, (oy == -1) or (ox == -1)))
    return tuple(plan)


def _masks_s1(TN, Hg, Wg):
    """(9, TN*Hg*Wg) bf16 0/1 masks: stride-1 tap (oy, ox) valid at pixel (i, j)."""
    i = np.arange(Hg)[:, None]
    j = np.arange(Wg)[None, :]
    rows = []
    for oy, ox in _TAPS:
        valid = (i + oy >= 0) & (i + oy < Hg) & (j + ox >= 0) & (j + ox < Wg)
        rows.append(np.broadcast_to(valid, (TN, Hg, Wg)).reshape(-1))
    return jnp.asarray(np.stack(rows), dtype=jnp.bfloat16)


def _masks_s2(TN, Ho, Wo):
    """(9, TN*Ho*Wo) bf16 0/1 masks for stride-2 polyphase taps (H, W even: only
    oy == -1 at output row 0 / ox == -1 at output col 0 fall outside the input)."""
    i = np.arange(Ho)[:, None]
    j = np.arange(Wo)[None, :]
    rows = []
    for oy, ox in _TAPS:
        valid = np.ones((Ho, Wo), dtype=bool)
        if oy == -1:
            valid = valid & (i >= 1)
        if ox == -1:
            valid = valid & (j >= 1)
        rows.append(np.broadcast_to(valid, (TN, Ho, Wo)).reshape(-1))
    return jnp.asarray(np.stack(rows), dtype=jnp.bfloat16)


def _pick_images_per_tile(N, hw, lane_tile):
    """Largest divisor TN of N with TN*hw a multiple of 128 (lane-dense) and
    <= lane_tile; fall back to the whole batch (single full-array block)."""
    best = None
    for tn in range(1, N + 1):
        if N % tn == 0 and (tn * hw) % 128 == 0 and tn * hw <= lane_tile:
            best = tn
    return best if best is not None else N


# ---------------------------------------------------------------------------
# kernels
# ---------------------------------------------------------------------------

def _taps_dot(xb, mask_ref, w_ref, patches_ref, tap_plan, cin):
    """Build the 9 stride-1 taps of xb ((Cin, Rt) bf16) with lane rolls + bf16
    border masks, slice-store them into the persistent patches scratch (no
    concat), and run ONE (Cout, 9*Cin) x (9*Cin, Rt) MXU matmul (f32 accum)."""
    for t, (k, needs_mask) in enumerate(tap_plan):
        tap = xb if k == 0 else jnp.roll(xb, -k, axis=1)
        if needs_mask:
            tap = tap * mask_ref[t:t + 1, :]
        patches_ref[t * cin:(t + 1) * cin, :] = tap
    return jnp.dot(w_ref[...], patches_ref[...], preferred_element_type=jnp.float32)


def _write_conv_outputs(acc, y_ref, s_ref, ss_ref):
    """Raw conv output tile + per-tile single-pass BN partials (sum, sum-of-sq)."""
    y_ref[...] = acc
    s_ref[...] = jnp.sum(acc, axis=1, keepdims=True)[None]
    ss_ref[...] = jnp.sum(acc * acc, axis=1, keepdims=True)[None]


def _conv_s1_kernel(x_ref, mask_ref, w_ref, y_ref, s_ref, ss_ref, patches_ref,
                    *, tap_plan, cin):
    """pass 1 (stride-1 block): conv1 raw + per-tile BN partial stats."""
    xb = x_ref[...].astype(jnp.bfloat16)
    acc = _taps_dot(xb, mask_ref, w_ref, patches_ref, tap_plan, cin)
    _write_conv_outputs(acc, y_ref, s_ref, ss_ref)


def _conv_s2_kernel(ee_ref, eo_ref, oe_ref, oo_ref, mask_ref, w_ref,
                    y_ref, s_ref, ss_ref, patches_ref, *, tap_plan, cin):
    """pass 1 (stride-2 block): conv1 built in-kernel from the 4 polyphase planes
    (exactly 1x the input data) + per-tile BN partial stats."""
    planes = (ee_ref[...].astype(jnp.bfloat16), eo_ref[...].astype(jnp.bfloat16),
              oe_ref[...].astype(jnp.bfloat16), oo_ref[...].astype(jnp.bfloat16))
    for t, (p, k, needs_mask) in enumerate(tap_plan):
        tap = planes[p] if k == 0 else jnp.roll(planes[p], -k, axis=1)
        if needs_mask:
            tap = tap * mask_ref[t:t + 1, :]
        patches_ref[t * cin:(t + 1) * cin, :] = tap
    acc = jnp.dot(w_ref[...], patches_ref[...], preferred_element_type=jnp.float32)
    _write_conv_outputs(acc, y_ref, s_ref, ss_ref)


def _bnrelu_conv_s1_kernel(x_ref, scale_ref, shift_ref, mask_ref, w_ref,
                           y_ref, s_ref, ss_ref, patches_ref, *, tap_plan, cin):
    """pass 2: exact batch-BN1 (affine from pass-1 stats) + ReLU + conv2 raw +
    per-tile BN partial stats."""
    h = jnp.maximum(x_ref[...] * scale_ref[...] + shift_ref[...], 0.0)
    acc = _taps_dot(h.astype(jnp.bfloat16), mask_ref, w_ref, patches_ref, tap_plan, cin)
    _write_conv_outputs(acc, y_ref, s_ref, ss_ref)


def _finalize_kernel(y_ref, sc_ref, scale_ref, shift_ref, o_ref, *, sub, cin):
    """pass 3: BN2 + ReLU, LambdaLayer shortcut (identity / zero channel pad via
    sublane-sliced stores -- no (c2, R) concat), final ReLU."""
    h2 = jnp.maximum(y_ref[...] * scale_ref[...] + shift_ref[...], 0.0)
    sc = sc_ref[...]
    if sub > 0:
        o_ref[0:sub, :] = h2[0:sub, :]                      # relu(h2 + 0) = h2 (>= 0)
        o_ref[sub:sub + cin, :] = jnp.maximum(h2[sub:sub + cin, :] + sc, 0.0)
        if sub + cin < h2.shape[0]:
            o_ref[sub + cin:, :] = h2[sub + cin:, :]
    else:
        o_ref[...] = jnp.maximum(h2 + sc, 0.0)


# ---------------------------------------------------------------------------
# module wrapper
# ---------------------------------------------------------------------------

class MutableBlockPallas:
    """Pallas equivalent of MutableBlock(idx_list, stride) at the default
    (= maximum) slimmable channel choices.  NCHW in / NCHW out like PyTorch.

    Forward = three pixel-tiled, "parallel"-gridded Pallas passes split at the
    BatchNorm boundaries (exact training-mode batch statistics):
      pass 1: conv1 (im2col built in-kernel)          -> y1 raw + partial stats
      pass 2: BN1 + ReLU + conv2 (im2col in-kernel)   -> y2 raw + partial stats
      pass 3: BN2 + ReLU + LambdaLayer shortcut + ReLU -> out
    """

    def __init__(self, idx_list, stride=1, key=None, lane_tile=2048):
        assert stride in (1, 2)
        if key is None:
            key = jax.random.PRNGKey(0)
        mc = get_configs()
        self.stride = stride
        # lane_tile bounds the per-step pixel-tile width; 2048 keeps the per-step
        # VMEM footprint (patches scratch dominates: 9*C*lane_tile*2B) far under
        # the 32 MiB default scoped limit even at C=64 (v7x-safe).
        self.lane_tile = int(lane_tile)
        self.cin = max(mc[idx_list[0]])            # conv1 in channels
        self.c1 = max(mc[idx_list[0] + 1])         # conv1 out / conv2 in
        assert max(mc[idx_list[1]]) == self.c1
        self.c2 = max(mc[idx_list[1] + 1])         # conv2 out channels
        # LambdaLayer pads (planes - in_planes)/2 zero channels on each side.
        self.sub_channel = (self.c2 - self.cin) // 2
        self.eps = 1e-5

        k = jax.random.split(key, 6)
        # PyTorch conv weight layout [Cout, Cin, kh, kw]
        self.w1_torch = 0.1 * jax.random.normal(k[0], (self.c1, self.cin, 3, 3), jnp.float32)
        self.w2_torch = 0.1 * jax.random.normal(k[1], (self.c2, self.c1, 3, 3), jnp.float32)
        self.g1 = 1.0 + 0.1 * jax.random.normal(k[2], (self.c1,), jnp.float32)
        self.b1 = 0.1 * jax.random.normal(k[3], (self.c1,), jnp.float32)
        self.g2 = 1.0 + 0.1 * jax.random.normal(k[4], (self.c2,), jnp.float32)
        self.b2 = 0.1 * jax.random.normal(k[5], (self.c2,), jnp.float32)

        # im2col weight layout (Cout, 9*Cin), tap-major / cin-minor; bf16 MXU operands.
        self.w1_mat = jnp.transpose(self.w1_torch, (0, 2, 3, 1)) \
            .reshape(self.c1, 9 * self.cin).astype(jnp.bfloat16)
        self.w2_mat = jnp.transpose(self.w2_torch, (0, 2, 3, 1)) \
            .reshape(self.c2, 9 * self.c1).astype(jnp.bfloat16)
        self.g1c = self.g1.reshape(-1, 1)
        self.b1c = self.b1.reshape(-1, 1)
        self.g2c = self.g2.reshape(-1, 1)
        self.b2c = self.b2.reshape(-1, 1)

        # jitted wrapper: masks become baked constants, no eager per-op dispatch.
        self._fwd = jax.jit(self._forward)

    def __call__(self, x_nchw):
        return self._fwd(x_nchw)

    # -- exact training-mode batch-BN affine from per-tile partial sums --------
    def _bn_affine(self, s_tiles, ss_tiles, R, g, b):
        ssum = jnp.sum(s_tiles, axis=0)                     # (C, 1)
        sqsum = jnp.sum(ss_tiles, axis=0)
        m = ssum / R
        v = jnp.maximum(sqsum / R - m * m, 0.0)
        scale = g * jax.lax.rsqrt(v + self.eps)
        return scale, b - m * scale

    def _forward(self, x_nchw):
        x = x_nchw.astype(jnp.float32)
        N, Cin, H, W = x.shape
        assert Cin == self.cin
        s = self.stride
        if s == 2:
            assert H % 2 == 0 and W % 2 == 0
        Ho, Wo = H // s, W // s
        hw = Ho * Wo
        R = N * hw
        TN = _pick_images_per_tile(N, hw, self.lane_tile)   # images per grid step
        Rt = TN * hw                                        # lane tile width
        T = R // Rt                                         # grid size
        c1, c2 = self.c1, self.c2

        cparams = pltpu.CompilerParams(dimension_semantics=("parallel",))

        def act_spec(C):                                    # (C, R) tiled on lanes
            return pl.BlockSpec((C, Rt), lambda t: (0, t))

        def const_spec(shape):                              # DMA once, stay resident
            nd = len(shape)
            return pl.BlockSpec(shape, lambda t, _nd=nd: (0,) * _nd)

        def stats_spec(C):                                  # per-tile partial stats
            return pl.BlockSpec((1, C, 1), lambda t: (t, 0, 0))

        def conv_outs(C):
            return ((jax.ShapeDtypeStruct((C, R), jnp.float32),
                     jax.ShapeDtypeStruct((T, C, 1), jnp.float32),
                     jax.ShapeDtypeStruct((T, C, 1), jnp.float32)),
                    (act_spec(C), stats_spec(C), stats_spec(C)))

        mask1 = _masks_s1(TN, Ho, Wo)      # stride-1 masks (conv2; conv1 if s==1)
        plan1 = _tap_plan_s1(Wo)

        # ---- pass 1: conv1 raw + per-tile BN partial sums ---------------------
        out_shape1, out_specs1 = conv_outs(c1)
        if s == 1:
            x2d = jnp.transpose(x, (1, 0, 2, 3)).reshape(Cin, R)   # channel-major (C, R)
            sc2d = x2d                                             # shortcut = identity
            y1, s1, ss1 = pl.pallas_call(
                functools.partial(_conv_s1_kernel, tap_plan=plan1, cin=Cin),
                out_shape=out_shape1,
                grid=(T,),
                in_specs=[act_spec(Cin), const_spec((9, Rt)),
                          const_spec((c1, 9 * Cin))],
                out_specs=out_specs1,
                scratch_shapes=[pltpu.VMEM((9 * Cin, Rt), jnp.bfloat16)],
                compiler_params=cparams,
            )(x2d, mask1, self.w1_mat)
        else:
            # 4 polyphase planes of x (even/odd rows x even/odd cols): exactly 1x
            # the input data; EE doubles as the ::2-subsampled shortcut input.
            def plane(r0, c0):
                return jnp.transpose(x[:, :, r0::2, c0::2], (1, 0, 2, 3)).reshape(Cin, R)
            ee, eo, oe, oo = plane(0, 0), plane(0, 1), plane(1, 0), plane(1, 1)
            sc2d = ee
            mask2 = _masks_s2(TN, Ho, Wo)
            plan2 = _tap_plan_s2(Wo)
            y1, s1, ss1 = pl.pallas_call(
                functools.partial(_conv_s2_kernel, tap_plan=plan2, cin=Cin),
                out_shape=out_shape1,
                grid=(T,),
                in_specs=[act_spec(Cin)] * 4 + [const_spec((9, Rt)),
                                                const_spec((c1, 9 * Cin))],
                out_specs=out_specs1,
                scratch_shapes=[pltpu.VMEM((9 * Cin, Rt), jnp.bfloat16)],
                compiler_params=cparams,
            )(ee, eo, oe, oo, mask2, self.w1_mat)

        scale1, shift1 = self._bn_affine(s1, ss1, R, self.g1c, self.b1c)

        # ---- pass 2: BN1 + ReLU + conv2 raw + per-tile BN partial sums --------
        out_shape2, out_specs2 = conv_outs(c2)
        y2, s2, ss2 = pl.pallas_call(
            functools.partial(_bnrelu_conv_s1_kernel, tap_plan=plan1, cin=c1),
            out_shape=out_shape2,
            grid=(T,),
            in_specs=[act_spec(c1), const_spec((c1, 1)), const_spec((c1, 1)),
                      const_spec((9, Rt)), const_spec((c2, 9 * c1))],
            out_specs=out_specs2,
            scratch_shapes=[pltpu.VMEM((9 * c1, Rt), jnp.bfloat16)],
            compiler_params=cparams,
        )(y1, scale1, shift1, mask1, self.w2_mat)

        scale2, shift2 = self._bn_affine(s2, ss2, R, self.g2c, self.b2c)

        # ---- pass 3: BN2 + ReLU + LambdaLayer shortcut + ReLU ------------------
        # TODO(synk): for stride=1 with sub_channel>0 a literal LambdaLayer would
        # also ::2-subsample (shape-inconsistent at stride 1); only the channel
        # zero-pad is applied, matching standard ResNet20 configs.
        out2d = pl.pallas_call(
            functools.partial(_finalize_kernel, sub=self.sub_channel, cin=Cin),
            out_shape=jax.ShapeDtypeStruct((c2, R), jnp.float32),
            grid=(T,),
            in_specs=[act_spec(c2), act_spec(Cin),
                      const_spec((c2, 1)), const_spec((c2, 1))],
            out_specs=act_spec(c2),
            compiler_params=cparams,
        )(y2, sc2d, scale2, shift2)

        out = out2d.reshape(c2, N, Ho, Wo)
        return jnp.transpose(out, (1, 0, 2, 3))            # back to NCHW

    # pure-JAX reference (XLA conv, bf16 operands / f32 accumulate, NCHW).
    def reference(self, x_nchw):
        x = x_nchw.astype(jnp.float32)
        s = self.stride

        def conv(inp, w, stride):
            return jax.lax.conv_general_dilated(
                inp.astype(jnp.bfloat16), w.astype(jnp.bfloat16),
                (stride, stride), ((1, 1), (1, 1)),
                dimension_numbers=('NCHW', 'OIHW', 'NCHW'),
                preferred_element_type=jnp.float32)

        def bn_relu(y, g, b):
            m = jnp.mean(y, axis=(0, 2, 3), keepdims=True)
            v = jnp.mean(jnp.square(y - m), axis=(0, 2, 3), keepdims=True)
            gg = g.reshape(1, -1, 1, 1)
            bb = b.reshape(1, -1, 1, 1)
            return jnp.maximum((y - m) * jax.lax.rsqrt(v + self.eps) * gg + bb, 0.0)

        h = bn_relu(conv(x, self.w1_torch, s), self.g1, self.b1)
        h = bn_relu(conv(h, self.w2_torch, 1), self.g2, self.b2)
        if s == 1 and self.sub_channel == 0:
            sc = x
        else:
            sc = jnp.pad(x[:, :, ::2, ::2],
                         ((0, 0), (self.sub_channel, self.sub_channel), (0, 0), (0, 0)))
        return jnp.maximum(h + sc, 0.0)


if __name__ == "__main__":
    key = jax.random.PRNGKey(0)

    # stride=1 block (idx_list=[1,2]): 16->16->16, shortcut = identity.
    # lane_tile=256 is deliberately small so the demo exercises a 2-step grid.
    blk1 = MutableBlockPallas(idx_list=[1, 2], stride=1, key=key, lane_tile=256)
    x1 = jax.random.normal(jax.random.fold_in(key, 1), (2, blk1.cin, 16, 16), jnp.float32)
    y1 = jax.block_until_ready(blk1(x1))
    r1 = jax.block_until_ready(blk1.reference(x1))
    assert y1.shape == r1.shape == (2, blk1.c2, 16, 16)
    err1 = float(jnp.max(jnp.abs(y1 - r1)))

    # stride=2 block (idx_list=[6,7]): 16->32->32, shortcut = ::2 subsample +
    # symmetric zero channel pad.  lane_tile=128 -> 2-step grid at this size.
    blk2 = MutableBlockPallas(idx_list=[6, 7], stride=2,
                              key=jax.random.fold_in(key, 2), lane_tile=128)
    x2 = jax.random.normal(jax.random.fold_in(key, 3), (4, blk2.cin, 16, 16), jnp.float32)
    y2 = jax.block_until_ready(blk2(x2))
    r2 = jax.block_until_ready(blk2.reference(x2))
    assert y2.shape == r2.shape == (4, blk2.c2, 8, 8)
    err2 = float(jnp.max(jnp.abs(y2 - r2)))

    # Both pipelines use bf16 matmul operands with f32 accumulation; residual
    # differences come from accumulation order, so 2e-2 absolute catches any
    # real layout/indexing bug while being robust to bf16 rounding.
    assert err1 < 2e-2 and err2 < 2e-2, (err1, err2)
    print("KERNEL_OK")
</pallas_src>

<mosaic_0001>
module attributes {stable_mosaic.version = 11 : i64} {
  func.func @_conv_s1_kernel(%arg0: i32, %arg1: memref<16x256xf32, #tpu.memory_space<vmem>>, %arg2: memref<9x256xbf16, #tpu.memory_space<vmem>>, %arg3: memref<16x144xbf16, #tpu.memory_space<vmem>>, %arg4: memref<16x256xf32, #tpu.memory_space<vmem>>, %arg5: memref<1x16x1xf32, #tpu.memory_space<vmem>>, %arg6: memref<1x16x1xf32, #tpu.memory_space<vmem>>, %arg7: memref<144x256xbf16, #tpu.memory_space<vmem>>) attributes {dimension_semantics = [#tpu.dimension_semantics<parallel>], iteration_bounds = array<i64: 2>, scalar_prefetch = 0 : i64, scratch_operands = 1 : i64, tpu.core_type = #tpu.core_type<tc>, window_params = [{transform_indices = @transform_0, window_bounds = array<i64: 16, 256>}, {pipeline_mode = #tpu.pipeline_mode<synchronous>, transform_indices = @transform_1, window_bounds = array<i64: 9, 256>}, {pipeline_mode = #tpu.pipeline_mode<synchronous>, transform_indices = @transform_2, window_bounds = array<i64: 16, 144>}, {transform_indices = @transform_3, window_bounds = array<i64: 16, 256>}, {transform_indices = @transform_4, window_bounds = array<i64: 1, 16, 1>}, {transform_indices = @transform_5, window_bounds = array<i64: 1, 16, 1>}]} {
    %c0 = arith.constant 0 : index
    %c0_0 = arith.constant 0 : index
    %0 = vector.load %arg1[%c0, %c0_0] : memref<16x256xf32, #tpu.memory_space<vmem>>, vector<16x256xf32>
    %1 = arith.truncf %0 : vector<16x256xf32> to vector<16x256xbf16>
    %2 = vector.extract_strided_slice %1 {offsets = [0, 239], sizes = [16, 17], strides = [1, 1]} : vector<16x256xbf16> to vector<16x17xbf16>
    %3 = vector.extract_strided_slice %1 {offsets = [0, 0], sizes = [16, 239], strides = [1, 1]} : vector<16x256xbf16> to vector<16x239xbf16>
    %4 = tpu.concatenate %2, %3 in 1 : vector<16x17xbf16>, vector<16x239xbf16> -> vector<16x256xbf16>
    %c0_1 = arith.constant 0 : index
    %c0_2 = arith.constant 0 : index
    %5 = vector.load %arg2[%c0_1, %c0_2] : memref<9x256xbf16, #tpu.memory_space<vmem>>, vector<1x256xbf16>
    %6 = vector.broadcast %5 : vector<1x256xbf16> to vector<16x256xbf16>
    %7 = arith.mulf %4, %6 : vector<16x256xbf16>
    %c0_3 = arith.constant 0 : index
    %c0_4 = arith.constant 0 : index
    %8 = vector.load %arg7[%c0_3, %c0_4] : memref<144x256xbf16, #tpu.memory_space<vmem>>, vector<16x256xbf16>
    tpu.vector_store %arg7[%c0_3, %c0_4], %7 {strides = array<i32>} : memref<144x256xbf16, #tpu.memory_space<vmem>>, vector<16x256xbf16>,
    %9 = vector.extract_strided_slice %1 {offsets = [0, 240], sizes = [16, 16], strides = [1, 1]} : vector<16x256xbf16> to vector<16x16xbf16>
    %10 = vector.extract_strided_slice %1 {offsets = [0, 0], sizes = [16, 240], strides = [1, 1]} : vector<16x256xbf16> to vector<16x240xbf16>
    %11 = tpu.concatenate %9, %10 in 1 : vector<16x16xbf16>, vector<16x240xbf16> -> vector<16x256xbf16>
    %c1 = arith.constant 1 : index
    %c0_5 = arith.constant 0 : index
    %12 = vector.load %arg2[%c1, %c0_5] : memref<9x256xbf16, #tpu.memory_space<vmem>>, vector<1x256xbf16>
    %13 = vector.broadcast %12 : vector<1x256xbf16> to vector<16x256xbf16>
    %14 = arith.mulf %11, %13 : vector<16x256xbf16>
    %c16 = arith.constant 16 : index
    %c0_6 = arith.constant 0 : index
    %15 = vector.load %arg7[%c16, %c0_6] : memref<144x256xbf16, #tpu.memory_space<vmem>>, vector<16x256xbf16>
    tpu.vector_store %arg7[%c16, %c0_6], %14 {strides = array<i32>} : memref<144x256xbf16, #tpu.memory_space<vmem>>, vector<16x256xbf16>,
    %16 = vector.extract_strided_slice %1 {offsets = [0, 241], sizes = [16, 15], strides = [1, 1]} : vector<16x256xbf16> to vector<16x15xbf16>
    %17 = vector.extract_strided_slice %1 {offsets = [0, 0], sizes = [16, 241], strides = [1, 1]} : vector<16x256xbf16> to vector<16x241xbf16>
    %18 = tpu.concatenate %16, %17 in 1 : vector<16x15xbf16>, vector<16x241xbf16> -> vector<16x256xbf16>
    %c2 = arith.constant 2 : index
    %c0_7 = arith.constant 0 : index
    %19 = vector.load %arg2[%c2, %c0_7] : memref<9x256xbf16, #tpu.memory_space<vmem>>, vector<1x256xbf16>
    %20 = vector.broadcast %19 : vector<1x256xbf16> to vector<16x256xbf16>
    %21 = arith.mulf %18, %20 : vector<16x256xbf16>
    %c32 = arith.constant 32 : index
    %c0_8 = arith.constant 0 : index
    %22 = vector.load %arg7[%c32, %c0_8] : memref<144x256xbf16, #tpu.memory_space<vmem>>, vector<16x256xbf16>
    tpu.vector_store %arg7[%c32, %c0_8], %21 {strides = array<i32>} : memref<144x256xbf16, #tpu.memory_space<vmem>>, vector<16x256xbf16>,
    %23 = vector.extract_strided_slice %1 {offsets = [0, 255], sizes = [16, 1], strides = [1, 1]} : vector<16x256xbf16> to vector<16x1xbf16>
    %24 = vector.extract_strided_slice %1 {offsets = [0, 0], sizes = [16, 255], strides = [1, 1]} : vector<16x256xbf16> to vector<16x255xbf16>
    %25 = tpu.concatenate %23, %24 in 1 : vector<16x1xbf16>, vector<16x255xbf16> -> vector<16x256xbf16>
    %c3 = arith.constant 3 : index
    %c0_9 = arith.constant 0 : index
    %26 = vector.load %arg2[%c3, %c0_9] : memref<9x256xbf16, #tpu.memory_space<vmem>>, vector<1x256xbf16>
    %27 = vector.broadcast %26 : vector<1x256xbf16> to vector<16x256xbf16>
    %28 = arith.mulf %25, %27 : vector<16x256xbf16>
    %c48 = arith.constant 48 : index
    %c0_10 = arith.constant 0 : index
    %29 = vector.load %arg7[%c48, %c0_10] : memref<144x256xbf16, #tpu.memory_space<vmem>>, vector<16x256xbf16>
    tpu.vector_store %arg7[%c48, %c0_10], %28 {strides = array<i32>} : memref<144x256xbf16, #tpu.memory_space<vmem>>, vector<16x256xbf16>,
    %c64 = arith.constant 64 : index
    %c0_11 = arith.constant 0 : index
    %30 = vector.load %arg7[%c64, %c0_11] : memref<144x256xbf16, #tpu.memory_space<vmem>>, vector<16x256xbf16>
    tpu.vector_store %arg7[%c64, %c0_11], %1 {strides = array<i32>} : memref<144x256xbf16, #tpu.memory_space<vmem>>, vector<16x256xbf16>,
    %31 = vector.extract_strided_slice %1 {offsets = [0, 1], sizes = [16, 255], strides = [1, 1]} : vector<16x256xbf16> to vector<16x255xbf16>
    %32 = vector.extract_strided_slice %1 {offsets = [0, 0], sizes = [16, 1], strides = [1, 1]} : vector<16x256xbf16> to vector<16x1xbf16>
    %33 = tpu.concatenate %31, %32 in 1 : vector<16x255xbf16>, vector<16x1xbf16> -> vector<16x256xbf16>
    %c5 = arith.constant 5 : index
    %c0_12 = arith.constant 0 : index
    %34 = vector.load %arg2[%c5, %c0_12] : memref<9x256xbf16, #tpu.memory_space<vmem>>, vector<1x256xbf16>
    %35 = vector.broadcast %34 : vector<1x256xbf16> to vector<16x256xbf16>
    %36 = arith.mulf %33, %35 : vector<16x256xbf16>
    %c80 = arith.constant 80 : index
    %c0_13 = arith.constant 0 : index
    %37 = vector.load %arg7[%c80, %c0_13] : memref<144x256xbf16, #tpu.memory_space<vmem>>, vector<16x256xbf16>
    tpu.vector_store %arg7[%c80, %c0_13], %36 {strides = array<i32>} : memref<144x256xbf16, #tpu.memory_space<vmem>>, vector<16x256xbf16>,
    %38 = vector.extract_strided_slice %1 {offsets = [0, 15], sizes = [16, 241], strides = [1, 1]} : vector<16x256xbf16> to vector<16x241xbf16>
    %39 = vector.extract_strided_slice %1 {offsets = [0, 0], sizes = [16, 15], strides = [1, 1]} : vector<16x256xbf16> to vector<16x15xbf16>
    %40 = tpu.concatenate %38, %39 in 1 : vector<16x241xbf16>, vector<16x15xbf16> -> vector<16x256xbf16>
    %c6 = arith.constant 6 : index
    %c0_14 = arith.constant 0 : index
    %41 = vector.load %arg2[%c6, %c0_14] : memref<9x256xbf16, #tpu.memory_space<vmem>>, vector<1x256xbf16>
    %42 = vector.broadcast %41 : vector<1x256xbf16> to vector<16x256xbf16>
    %43 = arith.mulf %40, %42 : vector<16x256xbf16>
    %c96 = arith.constant 96 : index
    %c0_15 = arith.constant 0 : index
    %44 = vector.load %arg7[%c96, %c0_15] : memref<144x256xbf16, #tpu.memory_space<vmem>>, vector<16x256xbf16>
    tpu.vector_store %arg7[%c96, %c0_15], %43 {strides = array<i32>} : memref<144x256xbf16, #tpu.memory_space<vmem>>, vector<16x256xbf16>,
    %45 = vector.extract_strided_slice %1 {offsets = [0, 16], sizes = [16, 240], strides = [1, 1]} : vector<16x256xbf16> to vector<16x240xbf16>
    %46 = vector.extract_strided_slice %1 {offsets = [0, 0], sizes = [16, 16], strides = [1, 1]} : vector<16x256xbf16> to vector<16x16xbf16>
    %47 = tpu.concatenate %45, %46 in 1 : vector<16x240xbf16>, vector<16x16xbf16> -> vector<16x256xbf16>
    %c7 = arith.constant 7 : index
    %c0_16 = arith.constant 0 : index
    %48 = vector.load %arg2[%c7, %c0_16] : memref<9x256xbf16, #tpu.memory_space<vmem>>, vector<1x256xbf16>
    %49 = vector.broadcast %48 : vector<1x256xbf16> to vector<16x256xbf16>
    %50 = arith.mulf %47, %49 : vector<16x256xbf16>
    %c112 = arith.constant 112 : index
    %c0_17 = arith.constant 0 : index
    %51 = vector.load %arg7[%c112, %c0_17] : memref<144x256xbf16, #tpu.memory_space<vmem>>, vector<16x256xbf16>
    tpu.vector_store %arg7[%c112, %c0_17], %50 {strides = array<i32>} : memref<144x256xbf16, #tpu.memory_space<vmem>>, vector<16x256xbf16>,
    %52 = vector.extract_strided_slice %1 {offsets = [0, 17], sizes = [16, 239], strides = [1, 1]} : vector<16x256xbf16> to vector<16x239xbf16>
    %53 = vector.extract_strided_slice %1 {offsets = [0, 0], sizes = [16, 17], strides = [1, 1]} : vector<16x256xbf16> to vector<16x17xbf16>
    %54 = tpu.concatenate %52, %53 in 1 : vector<16x239xbf16>, vector<16x17xbf16> -> vector<16x256xbf16>
    %c8 = arith.constant 8 : index
    %c0_18 = arith.constant 0 : index
    %55 = vector.load %arg2[%c8, %c0_18] : memref<9x256xbf16, #tpu.memory_space<vmem>>, vector<1x256xbf16>
    %56 = vector.broadcast %55 : vector<1x256xbf16> to vector<16x256xbf16>
    %57 = arith.mulf %54, %56 : vector<16x256xbf16>
    %c128 = arith.constant 128 : index
    %c0_19 = arith.constant 0 : index
    %58 = vector.load %arg7[%c128, %c0_19] : memref<144x256xbf16, #tpu.memory_space<vmem>>, vector<16x256xbf16>
    tpu.vector_store %arg7[%c128, %c0_19], %57 {strides = array<i32>} : memref<144x256xbf16, #tpu.memory_space<vmem>>, vector<16x256xbf16>,
    %c0_20 = arith.constant 0 : index
    %c0_21 = arith.constant 0 : index
    %59 = vector.load %arg3[%c0_20, %c0_21] : memref<16x144xbf16, #tpu.memory_space<vmem>>, vector<16x144xbf16>
    %c0_22 = arith.constant 0 : index
    %c0_23 = arith.constant 0 : index
    %60 = vector.load %arg7[%c0_22, %c0_23] : memref<144x256xbf16, #tpu.memory_space<vmem>>, vector<144x256xbf16>
    %cst = arith.constant dense<0.000000e+00> : vector<16x256xf32>
    %61 = tpu.matmul %59, %60, %cst {dimension_numbers = #tpu.dot_dimension_numbers<[1], [0], [0], [1], [0, 0, 1, 1], [], []>} : vector<16x144xbf16>, vector<144x256xbf16>, vector<16x256xf32> -> vector<16x256xf32>
    %c0_24 = arith.constant 0 : index
    %c0_25 = arith.constant 0 : index
    %62 = vector.load %arg4[%c0_24, %c0_25] : memref<16x256xf32, #tpu.memory_space<vmem>>, vector<16x256xf32>
    tpu.vector_store %arg4[%c0_24, %c0_25], %61 {strides = array<i32>} : memref<16x256xf32, #tpu.memory_space<vmem>>, vector<16x256xf32>,
    %cst_26 = arith.constant dense<0.000000e+00> : vector<16xf32>
    %63 = vector.multi_reduction <add>, %61, %cst_26 [1] : vector<16x256xf32> to vector<16xf32>
    %64 = vector.shape_cast %63 : vector<16xf32> to vector<16x1xf32>
    %65 = vector.shape_cast %64 : vector<16x1xf32> to vector<1x16x1xf32>
    %c0_27 = arith.constant 0 : index
    %c0_28 = arith.constant 0 : index
    %c0_29 = arith.constant 0 : index
    %66 = vector.load %arg5[%c0_27, %c0_28, %c0_29] : memref<1x16x1xf32, #tpu.memory_space<vmem>>, vector<1x16x1xf32>
    tpu.vector_store %arg5[%c0_27, %c0_28, %c0_29], %65 {strides = array<i32>} : memref<1x16x1xf32, #tpu.memory_space<vmem>>, vector<1x16x1xf32>,
    %67 = arith.mulf %61, %61 : vector<16x256xf32>
    %cst_30 = arith.constant dense<0.000000e+00> : vector<16xf32>
    %68 = vector.multi_reduction <add>, %67, %cst_30 [1] : vector<16x256xf32> to vector<16xf32>
    %69 = vector.shape_cast %68 : vector<16xf32> to vector<16x1xf32>
    %70 = vector.shape_cast %69 : vector<16x1xf32> to vector<1x16x1xf32>
    %c0_31 = arith.constant 0 : index
    %c0_32 = arith.constant 0 : index
    %c0_33 = arith.constant 0 : index
    %71 = vector.load %arg6[%c0_31, %c0_32, %c0_33] : memref<1x16x1xf32, #tpu.memory_space<vmem>>, vector<1x16x1xf32>
    tpu.vector_store %arg6[%c0_31, %c0_32, %c0_33], %70 {strides = array<i32>} : memref<1x16x1xf32, #tpu.memory_space<vmem>>, vector<1x16x1xf32>,
    return
  }
  func.func @transform_0(%arg0: i32) -> (i32, i32) {
    %c0_i32 = arith.constant 0 : i32
    %c0_i32_0 = arith.constant 0 : i32
    return %c0_i32, %arg0 : i32, i32
  }
  func.func @transform_1(%arg0: i32) -> (i32, i32) {
    %c0_i32 = arith.constant 0 : i32
    %c0_i32_0 = arith.constant 0 : i32
    %c0_i32_1 = arith.constant 0 : i32
    return %c0_i32, %c0_i32_0 : i32, i32
  }
  func.func @transform_2(%arg0: i32) -> (i32, i32) {
    %c0_i32 = arith.constant 0 : i32
    %c0_i32_0 = arith.constant 0 : i32
    %c0_i32_1 = arith.constant 0 : i32
    return %c0_i32, %c0_i32_0 : i32, i32
  }
  func.func @transform_3(%arg0: i32) -> (i32, i32) {
    %c0_i32 = arith.constant 0 : i32
    %c0_i32_0 = arith.constant 0 : i32
    return %c0_i32, %arg0 : i32, i32
  }
  func.func @transform_4(%arg0: i32) -> (i32, i32, i32) {
    %c0_i32 = arith.constant 0 : i32
    %c0_i32_0 = arith.constant 0 : i32
    %c0_i32_1 = arith.constant 0 : i32
    return %arg0, %c0_i32, %c0_i32_0 : i32, i32, i32
  }
  func.func @transform_5(%arg0: i32) -> (i32, i32, i32) {
    %c0_i32 = arith.constant 0 : i32
    %c0_i32_0 = arith.constant 0 : i32
    %c0_i32_1 = arith.constant 0 : i32
    return %arg0, %c0_i32, %c0_i32_0 : i32, i32, i32
  }
}

module attributes {stable_mosaic.version = 11 : i64} {
  func.func @_bnrelu_conv_s1_kernel(%arg0: i32, %arg1: memref<16x256xf32, #tpu.memory_space<vmem>>, %arg2: memref<16x1xf32, #tpu.memory_space<vmem>>, %arg3: memref<16x1xf32, #tpu.memory_space<vmem>>, %arg4: memref<9x256xbf16, #tpu.memory_space<vmem>>, %arg5: memref<16x144xbf16, #tpu.memory_space<vmem>>, %arg6: memref<16x256xf32, #tpu.memory_space<vmem>>, %arg7: memref<1x16x1xf32, #tpu.memory_space<vmem>>, %arg8: memref<1x16x1xf32, #tpu.memory_space<vmem>>, %arg9: memref<144x256xbf16, #tpu.memory_space<vmem>>) attributes {dimension_semantics = [#tpu.dimension_semantics<parallel>], iteration_bounds = array<i64: 2>, scalar_prefetch = 0 : i64, scratch_operands = 1 : i64, tpu.core_type = #tpu.core_type<tc>, window_params = [{transform_indices = @transform_0, window_bounds = array<i64: 16, 256>}, {pipeline_mode = #tpu.pipeline_mode<synchronous>, transform_indices = @transform_1, window_bounds = array<i64: 16, 1>}, {pipeline_mode = #tpu.pipeline_mode<synchronous>, transform_indices = @transform_2, window_bounds = array<i64: 16, 1>}, {pipeline_mode = #tpu.pipeline_mode<synchronous>, transform_indices = @transform_3, window_bounds = array<i64: 9, 256>}, {pipeline_mode = #tpu.pipeline_mode<synchronous>, transform_indices = @transform_4, window_bounds = array<i64: 16, 144>}, {transform_indices = @transform_5, window_bounds = array<i64: 16, 256>}, {transform_indices = @transform_6, window_bounds = array<i64: 1, 16, 1>}, {transform_indices = @transform_7, window_bounds = array<i64: 1, 16, 1>}]} {
    %c0 = arith.constant 0 : index
    %c0_0 = arith.constant 0 : index
    %0 = vector.load %arg1[%c0, %c0_0] : memref<16x256xf32, #tpu.memory_space<vmem>>, vector<16x256xf32>
    %c0_1 = arith.constant 0 : index
    %c0_2 = arith.constant 0 : index
    %1 = vector.load %arg2[%c0_1, %c0_2] : memref<16x1xf32, #tpu.memory_space<vmem>>, vector<16x1xf32>
    %2 = vector.broadcast %1 : vector<16x1xf32> to vector<16x256xf32>
    %3 = arith.mulf %0, %2 : vector<16x256xf32>
    %c0_3 = arith.constant 0 : index
    %c0_4 = arith.constant 0 : index
    %4 = vector.load %arg3[%c0_3, %c0_4] : memref<16x1xf32, #tpu.memory_space<vmem>>, vector<16x1xf32>
    %5 = vector.broadcast %4 : vector<16x1xf32> to vector<16x256xf32>
    %6 = arith.addf %3, %5 : vector<16x256xf32>
    %cst = arith.constant 0.000000e+00 : f32
    %7 = vector.broadcast %cst : f32 to vector<16x256xf32>
    %8 = arith.maximumf %6, %7 : vector<16x256xf32>
    %9 = arith.truncf %8 : vector<16x256xf32> to vector<16x256xbf16>
    %10 = vector.extract_strided_slice %9 {offsets = [0, 239], sizes = [16, 17], strides = [1, 1]} : vector<16x256xbf16> to vector<16x17xbf16>
    %11 = vector.extract_strided_slice %9 {offsets = [0, 0], sizes = [16, 239], strides = [1, 1]} : vector<16x256xbf16> to vector<16x239xbf16>
    %12 = tpu.concatenate %10, %11 in 1 : vector<16x17xbf16>, vector<16x239xbf16> -> vector<16x256xbf16>
    %c0_5 = arith.constant 0 : index
    %c0_6 = arith.constant 0 : index
    %13 = vector.load %arg4[%c0_5, %c0_6] : memref<9x256xbf16, #tpu.memory_space<vmem>>, vector<1x256xbf16>
    %14 = vector.broadcast %13 : vector<1x256xbf16> to vector<16x256xbf16>
    %15 = arith.mulf %12, %14 : vector<16x256xbf16>
    %c0_7 = arith.constant 0 : index
    %c0_8 = arith.constant 0 : index
    %16 = vector.load %arg9[%c0_7, %c0_8] : memref<144x256xbf16, #tpu.memory_space<vmem>>, vector<16x256xbf16>
    tpu.vector_store %arg9[%c0_7, %c0_8], %15 {strides = array<i32>} : memref<144x256xbf16, #tpu.memory_space<vmem>>, vector<16x256xbf16>,
    %17 = vector.extract_strided_slice %9 {offsets = [0, 240], sizes = [16, 16], strides = [1, 1]} : vector<16x256xbf16> to vector<16x16xbf16>
    %18 = vector.extract_strided_slice %9 {offsets = [0, 0], sizes = [16, 240], strides = [1, 1]} : vector<16x256xbf16> to vector<16x240xbf16>
    %19 = tpu.concatenate %17, %18 in 1 : vector<16x16xbf16>, vector<16x240xbf16> -> vector<16x256xbf16>
    %c1 = arith.constant 1 : index
    %c0_9 = arith.constant 0 : index
    %20 = vector.load %arg4[%c1, %c0_9] : memref<9x256xbf16, #tpu.memory_space<vmem>>, vector<1x256xbf16>
    %21 = vector.broadcast %20 : vector<1x256xbf16> to vector<16x256xbf16>
    %22 = arith.mulf %19, %21 : vector<16x256xbf16>
    %c16 = arith.constant 16 : index
    %c0_10 = arith.constant 0 : index
    %23 = vector.load %arg9[%c16, %c0_10] : memref<144x256xbf16, #tpu.memory_space<vmem>>, vector<16x256xbf16>
    tpu.vector_store %arg9[%c16, %c0_10], %22 {strides = array<i32>} : memref<144x256xbf16, #tpu.memory_space<vmem>>, vector<16x256xbf16>,
    %24 = vector.extract_strided_slice %9 {offsets = [0, 241], sizes = [16, 15], strides = [1, 1]} : vector<16x256xbf16> to vector<16x15xbf16>
    %25 = vector.extract_strided_slice %9 {offsets = [0, 0], sizes = [16, 241], strides = [1, 1]} : vector<16x256xbf16> to vector<16x241xbf16>
    %26 = tpu.concatenate %24, %25 in 1 : vector<16x15xbf16>, vector<16x241xbf16> -> vector<16x256xbf16>
    %c2 = arith.constant 2 : index
    %c0_11 = arith.constant 0 : index
    %27 = vector.load %arg4[%c2, %c0_11] : memref<9x256xbf16, #tpu.memory_space<vmem>>, vector<1x256xbf16>
    %28 = vector.broadcast %27 : vector<1x256xbf16> to vector<16x256xbf16>
    %29 = arith.mulf %26, %28 : vector<16x256xbf16>
    %c32 = arith.constant 32 : index
    %c0_12 = arith.constant 0 : index
    %30 = vector.load %arg9[%c32, %c0_12] : memref<144x256xbf16, #tpu.memory_space<vmem>>, vector<16x256xbf16>
    tpu.vector_store %arg9[%c32, %c0_12], %29 {strides = array<i32>} : memref<144x256xbf16, #tpu.memory_space<vmem>>, vector<16x256xbf16>,
    %31 = vector.extract_strided_slice %9 {offsets = [0, 255], sizes = [16, 1], strides = [1, 1]} : vector<16x256xbf16> to vector<16x1xbf16>
    %32 = vector.extract_strided_slice %9 {offsets = [0, 0], sizes = [16, 255], strides = [1, 1]} : vector<16x256xbf16> to vector<16x255xbf16>
    %33 = tpu.concatenate %31, %32 in 1 : vector<16x1xbf16>, vector<16x255xbf16> -> vector<16x256xbf16>
    %c3 = arith.constant 3 : index
    %c0_13 = arith.constant 0 : index
    %34 = vector.load %arg4[%c3, %c0_13] : memref<9x256xbf16, #tpu.memory_space<vmem>>, vector<1x256xbf16>
    %35 = vector.broadcast %34 : vector<1x256xbf16> to vector<16x256xbf16>
    %36 = arith.mulf %33, %35 : vector<16x256xbf16>
    %c48 = arith.constant 48 : index
    %c0_14 = arith.constant 0 : index
    %37 = vector.load %arg9[%c48, %c0_14] : memref<144x256xbf16, #tpu.memory_space<vmem>>, vector<16x256xbf16>
    tpu.vector_store %arg9[%c48, %c0_14], %36 {strides = array<i32>} : memref<144x256xbf16, #tpu.memory_space<vmem>>, vector<16x256xbf16>,
    %c64 = arith.constant 64 : index
    %c0_15 = arith.constant 0 : index
    %38 = vector.load %arg9[%c64, %c0_15] : memref<144x256xbf16, #tpu.memory_space<vmem>>, vector<16x256xbf16>
    tpu.vector_store %arg9[%c64, %c0_15], %9 {strides = array<i32>} : memref<144x256xbf16, #tpu.memory_space<vmem>>, vector<16x256xbf16>,
    %39 = vector.extract_strided_slice %9 {offsets = [0, 1], sizes = [16, 255], strides = [1, 1]} : vector<16x256xbf16> to vector<16x255xbf16>
    %40 = vector.extract_strided_slice %9 {offsets = [0, 0], sizes = [16, 1], strides = [1, 1]} : vector<16x256xbf16> to vector<16x1xbf16>
    %41 = tpu.concatenate %39, %40 in 1 : vector<16x255xbf16>, vector<16x1xbf16> -> vector<16x256xbf16>
    %c5 = arith.constant 5 : index
    %c0_16 = arith.constant 0 : index
    %42 = vector.load %arg4[%c5, %c0_16] : memref<9x256xbf16, #tpu.memory_space<vmem>>, vector<1x256xbf16>
    %43 = vector.broadcast %42 : vector<1x256xbf16> to vector<16x256xbf16>
    %44 = arith.mulf %41, %43 : vector<16x256xbf16>
    %c80 = arith.constant 80 : index
    %c0_17 = arith.constant 0 : index
    %45 = vector.load %arg9[%c80, %c0_17] : memref<144x256xbf16, #tpu.memory_space<vmem>>, vector<16x256xbf16>
    tpu.vector_store %arg9[%c80, %c0_17], %44 {strides = array<i32>} : memref<144x256xbf16, #tpu.memory_space<vmem>>, vector<16x256xbf16>,
    %46 = vector.extract_strided_slice %9 {offsets = [0, 15], sizes = [16, 241], strides = [1, 1]} : vector<16x256xbf16> to vector<16x241xbf16>
    %47 = vector.extract_strided_slice %9 {offsets = [0, 0], sizes = [16, 15], strides = [1, 1]} : vector<16x256xbf16> to vector<16x15xbf16>
    %48 = tpu.concatenate %46, %47 in 1 : vector<16x241xbf16>, vector<16x15xbf16> -> vector<16x256xbf16>
    %c6 = arith.constant 6 : index
    %c0_18 = arith.constant 0 : index
    %49 = vector.load %arg4[%c6, %c0_18] : memref<9x256xbf16, #tpu.memory_space<vmem>>, vector<1x256xbf16>
    %50 = vector.broadcast %49 : vector<1x256xbf16> to vector<16x256xbf16>
    %51 = arith.mulf %48, %50 : vector<16x256xbf16>
    %c96 = arith.constant 96 : index
    %c0_19 = arith.constant 0 : index
    %52 = vector.load %arg9[%c96, %c0_19] : memref<144x256xbf16, #tpu.memory_space<vmem>>, vector<16x256xbf16>
    tpu.vector_store %arg9[%c96, %c0_19], %51 {strides = array<i32>} : memref<144x256xbf16, #tpu.memory_space<vmem>>, vector<16x256xbf16>,
    %53 = vector.extract_strided_slice %9 {offsets = [0, 16], sizes = [16, 240], strides = [1, 1]} : vector<16x256xbf16> to vector<16x240xbf16>
    %54 = vector.extract_strided_slice %9 {offsets = [0, 0], sizes = [16, 16], strides = [1, 1]} : vector<16x256xbf16> to vector<16x16xbf16>
    %55 = tpu.concatenate %53, %54 in 1 : vector<16x240xbf16>, vector<16x16xbf16> -> vector<16x256xbf16>
    %c7 = arith.constant 7 : index
    %c0_20 = arith.constant 0 : index
    %56 = vector.load %arg4[%c7, %c0_20] : memref<9x256xbf16, #tpu.memory_space<vmem>>, vector<1x256xbf16>
    %57 = vector.broadcast %56 : vector<1x256xbf16> to vector<16x256xbf16>
    %58 = arith.mulf %55, %57 : vector<16x256xbf16>
    %c112 = arith.constant 112 : index
    %c0_21 = arith.constant 0 : index
    %59 = vector.load %arg9[%c112, %c0_21] : memref<144x256xbf16, #tpu.memory_space<vmem>>, vector<16x256xbf16>
    tpu.vector_store %arg9[%c112, %c0_21], %58 {strides = array<i32>} : memref<144x256xbf16, #tpu.memory_space<vmem>>, vector<16x256xbf16>,
    %60 = vector.extract_strided_slice %9 {offsets = [0, 17], sizes = [16, 239], strides = [1, 1]} : vector<16x256xbf16> to vector<16x239xbf16>
    %61 = vector.extract_strided_slice %9 {offsets = [0, 0], sizes = [16, 17], strides = [1, 1]} : vector<16x256xbf16> to vector<16x17xbf16>
    %62 = tpu.concatenate %60, %61 in 1 : vector<16x239xbf16>, vector<16x17xbf16> -> vector<16x256xbf16>
    %c8 = arith.constant 8 : index
    %c0_22 = arith.constant 0 : index
    %63 = vector.load %arg4[%c8, %c0_22] : memref<9x256xbf16, #tpu.memory_space<vmem>>, vector<1x256xbf16>
    %64 = vector.broadcast %63 : vector<1x256xbf16> to vector<16x256xbf16>
    %65 = arith.mulf %62, %64 : vector<16x256xbf16>
    %c128 = arith.constant 128 : index
    %c0_23 = arith.constant 0 : index
    %66 = vector.load %arg9[%c128, %c0_23] : memref<144x256xbf16, #tpu.memory_space<vmem>>, vector<16x256xbf16>
    tpu.vector_store %arg9[%c128, %c0_23], %65 {strides = array<i32>} : memref<144x256xbf16, #tpu.memory_space<vmem>>, vector<16x256xbf16>,
    %c0_24 = arith.constant 0 : index
    %c0_25 = arith.constant 0 : index
    %67 = vector.load %arg5[%c0_24, %c0_25] : memref<16x144xbf16, #tpu.memory_space<vmem>>, vector<16x144xbf16>
    %c0_26 = arith.constant 0 : index
    %c0_27 = arith.constant 0 : index
    %68 = vector.load %arg9[%c0_26, %c0_27] : memref<144x256xbf16, #tpu.memory_space<vmem>>, vector<144x256xbf16>
    %cst_28 = arith.constant dense<0.000000e+00> : vector<16x256xf32>
    %69 = tpu.matmul %67, %68, %cst_28 {dimension_numbers = #tpu.dot_dimension_numbers<[1], [0], [0], [1], [0, 0, 1, 1], [], []>} : vector<16x144xbf16>, vector<144x256xbf16>, vector<16x256xf32> -> vector<16x256xf32>
    %c0_29 = arith.constant 0 : index
    %c0_30 = arith.constant 0 : index
    %70 = vector.load %arg6[%c0_29, %c0_30] : memref<16x256xf32, #tpu.memory_space<vmem>>, vector<16x256xf32>
    tpu.vector_store %arg6[%c0_29, %c0_30], %69 {strides = array<i32>} : memref<16x256xf32, #tpu.memory_space<vmem>>, vector<16x256xf32>,
    %cst_31 = arith.constant dense<0.000000e+00> : vector<16xf32>
    %71 = vector.multi_reduction <add>, %69, %cst_31 [1] : vector<16x256xf32> to vector<16xf32>
    %72 = vector.shape_cast %71 : vector<16xf32> to vector<16x1xf32>
    %73 = vector.shape_cast %72 : vector<16x1xf32> to vector<1x16x1xf32>
    %c0_32 = arith.constant 0 : index
    %c0_33 = arith.constant 0 : index
    %c0_34 = arith.constant 0 : index
    %74 = vector.load %arg7[%c0_32, %c0_33, %c0_34] : memref<1x16x1xf32, #tpu.memory_space<vmem>>, vector<1x16x1xf32>
    tpu.vector_store %arg7[%c0_32, %c0_33, %c0_34], %73 {strides = array<i32>} : memref<1x16x1xf32, #tpu.memory_space<vmem>>, vector<1x16x1xf32>,
    %75 = arith.mulf %69, %69 : vector<16x256xf32>
    %cst_35 = arith.constant dense<0.000000e+00> : vector<16xf32>
    %76 = vector.multi_reduction <add>, %75, %cst_35 [1] : vector<16x256xf32> to vector<16xf32>
    %77 = vector.shape_cast %76 : vector<16xf32> to vector<16x1xf32>
    %78 = vector.shape_cast %77 : vector<16x1xf32> to vector<1x16x1xf32>
    %c0_36 = arith.constant 0 : index
    %c0_37 = arith.constant 0 : index
    %c0_38 = arith.constant 0 : index
    %79 = vector.load %arg8[%c0_36, %c0_37, %c0_38] : memref<1x16x1xf32, #tpu.memory_space<vmem>>, vector<1x16x1xf32>
    tpu.vector_store %arg8[%c0_36, %c0_37, %c0_38], %78 {strides = array<i32>} : memref<1x16x1xf32, #tpu.memory_space<vmem>>, vector<1x16x1xf32>,
    return
  }
  func.func @transform_0(%arg0: i32) -> (i32, i32) {
    %c0_i32 = arith.constant 0 : i32
    %c0_i32_0 = arith.constant 0 : i32
    return %c0_i32, %arg0 : i32, i32
  }
  func.func @transform_1(%arg0: i32) -> (i32, i32) {
    %c0_i32 = arith.constant 0 : i32
    %c0_i32_0 = arith.constant 0 : i32
    %c0_i32_1 = arith.constant 0 : i32
    return %c0_i32, %c0_i32_0 : i32, i32
  }
  func.func @transform_2(%arg0: i32) -> (i32, i32) {
    %c0_i32 = arith.constant 0 : i32
    %c0_i32_0 = arith.constant 0 : i32
    %c0_i32_1 = arith.constant 0 : i32
    return %c0_i32, %c0_i32_0 : i32, i32
  }
  func.func @transform_3(%arg0: i32) -> (i32, i32) {
    %c0_i32 = arith.constant 0 : i32
    %c0_i32_0 = arith.constant 0 : i32
    %c0_i32_1 = arith.constant 0 : i32
    return %c0_i32, %c0_i32_0 : i32, i32
  }
  func.func @transform_4(%arg0: i32) -> (i32, i32) {
    %c0_i32 = arith.constant 0 : i32
    %c0_i32_0 = arith.constant 0 : i32
    %c0_i32_1 = arith.constant 0 : i32
    return %c0_i32, %c0_i32_0 : i32, i32
  }
  func.func @transform_5(%arg0: i32) -> (i32, i32) {
    %c0_i32 = arith.constant 0 : i32
    %c0_i32_0 = arith.constant 0 : i32
    return %c0_i32, %arg0 : i32, i32
  }
  func.func @transform_6(%arg0: i32) -> (i32, i32, i32) {
    %c0_i32 = arith.constant 0 : i32
    %c0_i32_0 = arith.constant 0 : i32
    %c0_i32_1 = arith.constant 0 : i32
    return %arg0, %c0_i32, %c0_i32_0 : i32, i32, i32
  }
  func.func @transform_7(%arg0: i32) -> (i32, i32, i32) {
    %c0_i32 = arith.constant 0 : i32
    %c0_i32_0 = arith.constant 0 : i32
    %c0_i32_1 = arith.constant 0 : i32
    return %arg0, %c0_i32, %c0_i32_0 : i32, i32, i32
  }
}

module attributes {stable_mosaic.version = 11 : i64} {
  func.func @_finalize_kernel(%arg0: i32, %arg1: memref<16x256xf32, #tpu.memory_space<vmem>>, %arg2: memref<16x256xf32, #tpu.memory_space<vmem>>, %arg3: memref<16x1xf32, #tpu.memory_space<vmem>>, %arg4: memref<16x1xf32, #tpu.memory_space<vmem>>, %arg5: memref<16x256xf32, #tpu.memory_space<vmem>>) attributes {dimension_semantics = [#tpu.dimension_semantics<parallel>], iteration_bounds = array<i64: 2>, scalar_prefetch = 0 : i64, scratch_operands = 0 : i64, tpu.core_type = #tpu.core_type<tc>, window_params = [{transform_indices = @transform_0, window_bounds = array<i64: 16, 256>}, {transform_indices = @transform_1, window_bounds = array<i64: 16, 256>}, {pipeline_mode = #tpu.pipeline_mode<synchronous>, transform_indices = @transform_2, window_bounds = array<i64: 16, 1>}, {pipeline_mode = #tpu.pipeline_mode<synchronous>, transform_indices = @transform_3, window_bounds = array<i64: 16, 1>}, {transform_indices = @transform_4, window_bounds = array<i64: 16, 256>}]} {
    %c0 = arith.constant 0 : index
    %c0_0 = arith.constant 0 : index
    %0 = vector.load %arg1[%c0, %c0_0] : memref<16x256xf32, #tpu.memory_space<vmem>>, vector<16x256xf32>
    %c0_1 = arith.constant 0 : index
    %c0_2 = arith.constant 0 : index
    %1 = vector.load %arg3[%c0_1, %c0_2] : memref<16x1xf32, #tpu.memory_space<vmem>>, vector<16x1xf32>
    %2 = vector.broadcast %1 : vector<16x1xf32> to vector<16x256xf32>
    %3 = arith.mulf %0, %2 : vector<16x256xf32>
    %c0_3 = arith.constant 0 : index
    %c0_4 = arith.constant 0 : index
    %4 = vector.load %arg4[%c0_3, %c0_4] : memref<16x1xf32, #tpu.memory_space<vmem>>, vector<16x1xf32>
    %5 = vector.broadcast %4 : vector<16x1xf32> to vector<16x256xf32>
    %6 = arith.addf %3, %5 : vector<16x256xf32>
    %cst = arith.constant 0.000000e+00 : f32
    %7 = vector.broadcast %cst : f32 to vector<16x256xf32>
    %8 = arith.maximumf %6, %7 : vector<16x256xf32>
    %c0_5 = arith.constant 0 : index
    %c0_6 = arith.constant 0 : index
    %9 = vector.load %arg2[%c0_5, %c0_6] : memref<16x256xf32, #tpu.memory_space<vmem>>, vector<16x256xf32>
    %10 = arith.addf %8, %9 : vector<16x256xf32>
    %cst_7 = arith.constant 0.000000e+00 : f32
    %11 = vector.broadcast %cst_7 : f32 to vector<16x256xf32>
    %12 = arith.maximumf %10, %11 : vector<16x256xf32>
    %c0_8 = arith.constant 0 : index
    %c0_9 = arith.constant 0 : index
    %13 = vector.load %arg5[%c0_8, %c0_9] : memref<16x256xf32, #tpu.memory_space<vmem>>, vector<16x256xf32>
    tpu.vector_store %arg5[%c0_8, %c0_9], %12 {strides = array<i32>} : memref<16x256xf32, #tpu.memory_space<vmem>>, vector<16x256xf32>,
    return
  }
  func.func @transform_0(%arg0: i32) -> (i32, i32) {
    %c0_i32 = arith.constant 0 : i32
    %c0_i32_0 = arith.constant 0 : i32
    return %c0_i32, %arg0 : i32, i32
  }
  func.func @transform_1(%arg0: i32) -> (i32, i32) {
    %c0_i32 = arith.constant 0 : i32
    %c0_i32_0 = arith.constant 0 : i32
    return %c0_i32, %arg0 : i32, i32
  }
  func.func @transform_2(%arg0: i32) -> (i32, i32) {
    %c0_i32 = arith.constant 0 : i32
    %c0_i32_0 = arith.constant 0 : i32
    %c0_i32_1 = arith.constant 0 : i32
    return %c0_i32, %c0_i32_0 : i32, i32
  }
  func.func @transform_3(%arg0: i32) -> (i32, i32) {
    %c0_i32 = arith.constant 0 : i32
    %c0_i32_0 = arith.constant 0 : i32
    %c0_i32_1 = arith.constant 0 : i32
    return %c0_i32, %c0_i32_0 : i32, i32
  }
  func.func @transform_4(%arg0: i32) -> (i32, i32) {
    %c0_i32 = arith.constant 0 : i32
    %c0_i32_0 = arith.constant 0 : i32
    return %c0_i32, %arg0 : i32, i32
  }
}

</mosaic_0001>

<llo_original>
// kernel: _forward.3
$region0: #{_forward.3}
  #allocation0 [shape = 'u32[]', space=smem, size = 0x4, offset = 0x4, fixed_abs, tag = 'smem constant byte address 0x4 - core index']
  #allocation1 [shape = 'u32[144,128]{1,0:T(1,128)}', space=vmem, size = 0x12000, scoped, tag = 'internal scratch']
  #allocation2 [shape = 'bf16[144,256]{1,0:T(16,128)(2,1)}', space=vmem, size = 0x12000, scoped, tag = 'scratch operand']
  %s0 = inlined_call_operand.vmem [shape: f32[16,512], index: 0, kind: input, shape index: {}]
  %s1 = inlined_call_operand.vmem [shape: bf16[9,256], index: 1, kind: input, shape index: {}]
  %s2 = inlined_call_operand.vmem [shape: bf16[16,144], index: 2, kind: input, shape index: {}]
  %s3 = inlined_call_operand.vmem [shape: f32[16,512], index: 3, kind: output, shape index: {0}]
  %s4 = inlined_call_operand.vmem [shape: f32[2,16,1], index: 4, kind: output, shape index: {1}]
  %s5 = inlined_call_operand.vmem [shape: f32[2,16,1], index: 5, kind: output, shape index: {2}]
  %6 = xla_tuple %s3, %s4, %s5
  %s7 = sld [smem:[#allocation0]]
  $region103: #{_forward.3} parent=0
    _
  %s9 = ssub.s32 1, %s7
  %s10 = scalar_select 0, %s9, %s7
  $region1: #{_forward.3} parent=0
    #allocation3 [shape = 'u8[32768]{0}', space=vmem, size = 0x8000, scoped, tag = 'input window, operand 0']
    #allocation4 [shape = 'u8[32768]{0}', space=vmem, size = 0x8000, scoped, tag = 'output window, operand 0']
    loop: start=0, step=1, limit=4
    $region2: #{_forward.3} parent=1 // loop_pre_header
      _
    $region3: #{_forward.3} parent=1 // loop_header
      %s12 = sphi 0, %s16
      %p13 = scmp.ge.s32.totalorder %s12, 4
      %s22 = sphi 0, %s24
      %s25 = sphi 0, %s22
      %s26 = sphi 0, %s25
      %s42 = sphi 0, %s26
      %s46 = sphi 0, %s46
      %s48 = sphi 0, %s46
      %s49 = sphi 0, %s48
      %s63 = sphi 0, %s49
      %s67 = sphi 0, %s67
      %s69 = sphi 0, %s67
      %s70 = sphi 0, %s69
      %s84 = sphi 0, %s70
      %s90 = sphi 0, %s92
      %s93 = sphi 0, %s90
      %s94 = sphi 0, %s93
      %s110 = sphi 0, %s94
      %s116 = sphi 0, %s118
      %s119 = sphi 0, %s116
      %s120 = sphi 0, %s119
      %s136 = sphi 0, %s120
      %s142 = sphi 0, %s144
      %s145 = sphi 0, %s142
      %s146 = sphi 0, %s145
      %s162 = sphi 0, %s146
    $region4: #{_forward.3} parent=1 // loop_header_branch
      %15 = sbr.rel (%p13) target = $region8
    $region5: #{_forward.3} parent=1 // loop_body
      %s17 = ssub.s32 %s12, 1
      %s18 = ssub.s32 %s12, 2
      %s19 = sadd.s32 %s12, 1
      %s20 = ssub.s32 %s12, %s19
      %p21 = scmp.eq.s32.totalorder %s20, 0
      %s23 = sadd.s32 %s22, 1
      %s24 = scalar_select %p21, %s22, %s23
      %p27 = pneg %p21
      %p28 = scmp.eq.s32.totalorder %s12, 1
      %p29 = por %p27, %p28
      %p30 = scmp.ne.s32.totalorder %s22, %s25
      %p31 = scmp.eq.s32.totalorder %s12, 0
      %p32 = por %p30, %p31
      %p33 = scmp.ne.s32.totalorder %s22, %s25
      %p34 = scmp.eq.s32.totalorder %s17, 1
      %p35 = por %p33, %p34
      %p36 = scmp.ne.s32.totalorder %s25, %s26
      %p37 = scmp.eq.s32.totalorder %s17, 0
      %p38 = por %p36, %p37
      %p39 = scmp.ne.s32.totalorder %s25, %s26
      %p40 = scmp.eq.s32.totalorder %s18, 1
      %p41 = por %p39, %p40
      %p43 = scmp.ne.s32.totalorder %s26, %s42
      %p44 = scmp.eq.s32.totalorder %s18, 0
      %p45 = por %p43, %p44
      %s47 = sadd.s32 %s46, 1
      %p50 = scmp.eq.s32.totalorder %s12, 1
      %p51 = scmp.ne.s32.totalorder %s46, %s48
      %p52 = scmp.eq.s32.totalorder %s12, 0
      %p53 = por %p51, %p52
      %p54 = scmp.ne.s32.totalorder %s46, %s48
      %p55 = scmp.eq.s32.totalorder %s17, 1
      %p56 = por %p54, %p55
      %p57 = scmp.ne.s32.totalorder %s48, %s49
      %p58 = scmp.eq.s32.totalorder %s17, 0
      %p59 = por %p57, %p58
      %p60 = scmp.ne.s32.totalorder %s48, %s49
      %p61 = scmp.eq.s32.totalorder %s18, 1
      %p62 = por %p60, %p61
      %p64 = scmp.ne.s32.totalorder %s49, %s63
      %p65 = scmp.eq.s32.totalorder %s18, 0
      %p66 = por %p64, %p65
      %s68 = sadd.s32 %s67, 1
      %p71 = scmp.eq.s32.totalorder %s12, 1
      %p72 = scmp.ne.s32.totalorder %s67, %s69
      %p73 = scmp.eq.s32.totalorder %s12, 0
      %p74 = por %p72, %p73
      %p75 = scmp.ne.s32.totalorder %s67, %s69
      %p76 = scmp.eq.s32.totalorder %s17, 1
      %p77 = por %p75, %p76
      %p78 = scmp.ne.s32.totalorder %s69, %s70
      %p79 = scmp.eq.s32.totalorder %s17, 0
      %p80 = por %p78, %p79
      %p81 = scmp.ne.s32.totalorder %s69, %s70
      %p82 = scmp.eq.s32.totalorder %s18, 1
      %p83 = por %p81, %p82
      %p85 = scmp.ne.s32.totalorder %s70, %s84
      %p86 = scmp.eq.s32.totalorder %s18, 0
      %p87 = por %p85, %p86
      %s88 = ssub.s32 %s12, %s19
      %p89 = scmp.eq.s32.totalorder %s88, 0
      %s91 = sadd.s32 %s90, 1
      %s92 = scalar_select %p89, %s90, %s91
      %p95 = pneg %p89
      %p96 = scmp.eq.s32.totalorder %s12, 1
      %p97 = por %p95, %p96
      %p98 = scmp.ne.s32.totalorder %s90, %s93
      %p99 = scmp.eq.s32.totalorder %s12, 0
      %p100 = por %p98, %p99
      %p101 = scmp.ne.s32.totalorder %s90, %s93
      %p102 = scmp.eq.s32.totalorder %s17, 1
      %p103 = por %p101, %p102
      %p104 = scmp.ne.s32.totalorder %s93, %s94
      %p105 = scmp.eq.s32.totalorder %s17, 0
      %p106 = por %p104, %p105
      %p107 = scmp.ne.s32.totalorder %s93, %s94
      %p108 = scmp.eq.s32.totalorder %s18, 1
      %p109 = por %p107, %p108
      %p111 = scmp.ne.s32.totalorder %s94, %s110
      %p112 = scmp.eq.s32.totalorder %s18, 0
      %p113 = por %p111, %p112
      %s114 = ssub.s32 %s12, %s19
      %p115 = scmp.eq.s32.totalorder %s114, 0
      %s117 = sadd.s32 %s116, 1
      %s118 = scalar_select %p115, %s116, %s117
      %p121 = pneg %p115
      %p122 = scmp.eq.s32.totalorder %s12, 1
      %p123 = por %p121, %p122
      %p124 = scmp.ne.s32.totalorder %s116, %s119
      %p125 = scmp.eq.s32.totalorder %s12, 0
      %p126 = por %p124, %p125
      %p127 = scmp.ne.s32.totalorder %s116, %s119
      %p128 = scmp.eq.s32.totalorder %s17, 1
      %p129 = por %p127, %p128
      %p130 = scmp.ne.s32.totalorder %s119, %s120
      %p131 = scmp.eq.s32.totalorder %s17, 0
      %p132 = por %p130, %p131
      %p133 = scmp.ne.s32.totalorder %s119, %s120
      %p134 = scmp.eq.s32.totalorder %s18, 1
      %p135 = por %p133, %p134
      %p137 = scmp.ne.s32.totalorder %s120, %s136
      %p138 = scmp.eq.s32.totalorder %s18, 0
      %p139 = por %p137, %p138
      %s140 = ssub.s32 %s12, %s19
      %p141 = scmp.eq.s32.totalorder %s140, 0
      %s143 = sadd.s32 %s142, 1
      %s144 = scalar_select %p141, %s142, %s143
      %p147 = pneg %p141
      %p148 = scmp.eq.s32.totalorder %s12, 1
      %p149 = por %p147, %p148
      %p150 = scmp.ne.s32.totalorder %s142, %s145
      %p151 = scmp.eq.s32.totalorder %s12, 0
      %p152 = por %p150, %p151
      %p153 = scmp.ne.s32.totalorder %s142, %s145
      %p154 = scmp.eq.s32.totalorder %s17, 1
      %p155 = por %p153, %p154
      %p156 = scmp.ne.s32.totalorder %s145, %s146
      %p157 = scmp.eq.s32.totalorder %s17, 0
      %p158 = por %p156, %p157
      %p159 = scmp.ne.s32.totalorder %s145, %s146
      %p160 = scmp.eq.s32.totalorder %s18, 1
      %p161 = por %p159, %p160
      %p163 = scmp.ne.s32.totalorder %s146, %s162
      %p164 = scmp.eq.s32.totalorder %s18, 0
      %p165 = por %p163, %p164
      %p166 = scmp.le.s32.totalorder 1, %s12
      %p167 = scmp.lt.s32.totalorder %s12, 3
      %p168 = pnand %p166, %p167
      %p169 = pneg %p168
      // Predicated region
      $region9: #{_forward.3} parent=5 // pred_check
        _
      $region10: #{_forward.3} parent=5 // pred_check_branch
        %171 = sbr.rel (%p168) target = $region12
      $region11: #{_forward.3} parent=5 // pred_region
        %s172 = ssub.s32 %s12, 1
        // Predicated region
        $region13: #{_forward.3} parent=11 // pred_check
          %p173 = pneg %p59
        $region14: #{_forward.3} parent=11 // pred_check_branch
          %175 = sbr.rel (%p173) target = $region16
        $region15: #{_forward.3} parent=11 // pred_region
          _
        $region16: #{_forward.3} parent=11 // pred_fallthru
          _
        // Predicated region
        $region17: #{_forward.3} parent=11 // pred_check
          %p176 = pneg %p80
        $region18: #{_forward.3} parent=11 // pred_check_branch
          %178 = sbr.rel (%p176) target = $region20
        $region19: #{_forward.3} parent=11 // pred_region
          _
        $region20: #{_forward.3} parent=11 // pred_fallthru
          _
      $region12: #{_forward.3} parent=5 // pred_fallthru
        _
      %p179 = scmp.lt.s32.totalorder %s12, 2
      // Predicated region
      $region21: #{_forward.3} parent=5 // pred_check
        %p180 = pneg %p179
      $region22: #{_forward.3} parent=5 // pred_check_branch
        %182 = sbr.rel (%p180) target = $region24
      $region23: #{_forward.3} parent=5 // pred_region
        // Predicated region
        $region25: #{_forward.3} parent=23 // pred_check
          %p183 = pneg %p32
        $region26: #{_forward.3} parent=23 // pred_check_branch
          %185 = sbr.rel (%p183) target = $region28
        $region27: #{_forward.3} parent=23 // pred_region
          %s186 = sand.u32 %s22, 1
          %s187 = sand.u32 %s22, 1
          %s188 = smul.addr %s187, 32
          %s189 = scalar_lea.vmem [#allocation3], %s188
          %s190 = smul.u32 2, %s12
          %s191 = smul.addr %s190, 8
          %s192 = scalar_lea.vmem %s0, %s191
          // Predicated region
          $region29: #{_forward.3} parent=27 // pred_check
            _
          $region30: #{_forward.3} parent=27 // pred_check_branch
            %194 = sbr.rel (0) target = $region32
          $region31: #{_forward.3} parent=27 // pred_region
            // Predicated region
            $region33: #{_forward.3} parent=31 // pred_check
              _
            $region34: #{_forward.3} parent=31 // pred_check_branch
              %196 = sbr.rel (0) target = $region36
            $region35: #{_forward.3} parent=31 // pred_region
              loop: start=0, step=1, limit=1
              $region37: #{_forward.3} parent=35 // loop_pre_header
                _
              $region38: #{_forward.3} parent=35 // loop_header
                %s198 = sphi 0, %s202
                %p199 = scmp.ge.s32.totalorder %s198, 1
                %s203 = sphi %s192, %s192
                %s204 = sphi %s189, %s189
              $region39: #{_forward.3} parent=35 // loop_header_branch
                %201 = sbr.rel (%p199) target = $region43
              $region40: #{_forward.3} parent=35 // loop_body
                %v205 = vld [vmem:[%s203] sm:$0xff]
                %206 = vst [vmem:[%s204] sm:$0xff] %v205
                %v207 = vld [vmem:[%s203 + $0x8] sm:$0xff]
                %208 = vst [vmem:[%s204 + $0x8] sm:$0xff] %v207
                %v209 = vld [vmem:[%s203 + $0x20] sm:$0xff]
                %210 = vst [vmem:[%s204 + $0x10] sm:$0xff] %v209
                %v211 = vld [vmem:[%s203 + $0x28] sm:$0xff]
                %212 = vst [vmem:[%s204 + $0x18] sm:$0xff] %v211
              $region41: #{_forward.3} parent=35 // loop_footer
                %s202 = sadd.s32 1, %s198
              $region42: #{_forward.3} parent=35 // loop_footer_branch
                %197 = sbr.rel target = $region38
              $region43: #{_forward.3} parent=35 // loop_exit
                _
            $region36: #{_forward.3} parent=31 // pred_fallthru
              _
            // Predicated region
            $region44: #{_forward.3} parent=31 // pred_check
              _
            $region45: #{_forward.3} parent=31 // pred_check_branch
              %214 = sbr.rel target = $region47
            $region46: #{_forward.3} parent=31 // pred_region
              _
            $region47: #{_forward.3} parent=31 // pred_fallthru
              _
          $region32: #{_forward.3} parent=27 // pred_fallthru
            _
          %215 = vnop
        $region28: #{_forward.3} parent=23 // pred_fallthru
          _
      $region24: #{_forward.3} parent=5 // pred_fallthru
        _
      %p216 = scmp.le.s32.totalorder 1, %s12
      %p217 = scmp.lt.s32.totalorder %s12, 3
      %p218 = pnand %p216, %p217
      %p219 = pneg %p218
      // Predicated region
      $region48: #{_forward.3} parent=5 // pred_check
        _
      $region49: #{_forward.3} parent=5 // pred_check_branch
        %221 = sbr.rel (%p218) target = $region51
      $region50: #{_forward.3} parent=5 // pred_region
        %s222 = ssub.s32 %s12, 1
        %s223 = sand.u32 %s25, 1
        %s224 = sand.u32 %s25, 1
        %s225 = smul.addr %s224, 32
        %s226 = scalar_lea.vmem [#allocation3], %s225
        // Predicated region
        $region52: #{_forward.3} parent=50 // pred_check
          %p227 = pneg %p38
        $region53: #{_forward.3} parent=50 // pred_check_branch
          %229 = sbr.rel (%p227) target = $region55
        $region54: #{_forward.3} parent=50 // pred_region
          _
        $region55: #{_forward.3} parent=50 // pred_fallthru
          _
        %s230 = sand.u32 %s25, 1
        %s231 = sand.u32 %s25, 1
        %s232 = smul.addr %s231, 32
        %s233 = scalar_lea.vmem [#allocation3], %s232
        %p234 = pneg %p38
        %p235 = pneg %p35
        %p236 = pneg %p59
        %p237 = pneg %p56
        %p238 = pneg %p80
        %p239 = pneg %p77
        %p240 = pneg %p106
        %p241 = pneg %p103
        %s242 = sand.u32 %s93, 1
        %s243 = sand.u32 %s93, 1
        %s244 = smul.addr %s243, 32
        %s245 = scalar_lea.vmem [#allocation4], %s244
        %p246 = pneg %p132
        %p247 = pneg %p129
        %p248 = scmp.lt.s32.totalorder %s17, 1
        %s249 = scalar_select %p248, %s17, 1
        %s250 = smul.addr %s249, 2
        %s251 = smul.addr %s250, 8
        %s252 = scalar_lea.vmem %s4, %s251
        %p253 = pneg %p158
        %p254 = pneg %p155
        %p255 = scmp.lt.s32.totalorder %s17, 1
        %s256 = scalar_select %p255, %s17, 1
        %s257 = smul.addr %s256, 2
        %s258 = smul.addr %s257, 8
        %s259 = scalar_lea.vmem %s5, %s258
        %s260 = smul.u32 2, %s17
        %s261 = smul.u32 2, %s17
        %p262 = scmp.lt.s32.totalorder %s17, 1
        %s263 = scalar_select %p262, %s17, 1
        %s264 = smul.addr %s263, 2
        %s265 = smul.addr %s264, 8
        %s266 = scalar_lea.vmem %s4, %s265
        %p267 = scmp.lt.s32.totalorder %s17, 1
        %s268 = scalar_select %p267, %s17, 1
        %s269 = smul.addr %s268, 2
        %s270 = smul.addr %s269, 8
        %s271 = scalar_lea.vmem %s5, %s270
        %v273 = vld [vmem:[%s226] sm:$0xff]
        %v274 = vld [vmem:[%s226 + $0x8] sm:$0xff]
        %v275 = vld [vmem:[%s226 + $0x10] sm:$0xff]
        %v276 = vld [vmem:[%s226 + $0x18] sm:$0xff]
        %v277 = vpack.c.bf16 %v275, %v273
        %v278 = vpack.c.bf16 %v276, %v274
        %280 = vrot.lane.b32.xlu0 %v278, 17
        %v281 = vpop.permute.xlu0 %280
        %283 = vrot.lane.b32.xlu0 %v277, 17
        %v284 = vpop.permute.xlu0 %283
        %vm285 = vcmask 138240
        %v286 = vsel %vm285, %v284, %v281
        %vm288 = vcmask 138240
        %v291 = vsel %vm288, %v281, %v284
        %v293 = vld [vmem:[%s1] sm:$0x11]
        %v295 = vunpack.c.l.b16 %v293
        %v296 = vunpack.c.h.b16 %v293
        %v297 = vpack.c.b16 %v295, %v295
        %v298 = vpack.c.b16 %v296, %v296
        %v300 = vpack.i.b16 %v297, %v297
        %v302 = vlaneseq
        %v303 = vshrl.u32 %v302, 7
        %v304 = vsub.s32 0, %v303
        %v305 = vrot.slane %v300, %v304
        %v307 = vpack.i.b16 %v298, %v298
        %v309 = vlaneseq
        %v310 = vshrl.u32 %v309, 7
        %v311 = vsub.s32 0, %v310
        %v312 = vrot.slane %v307, %v311
        %v313 = vmul.bf16 %v291, %v305
        %v314 = vmul.bf16 %v286, %v312
        %315 = vst [vmem:[#allocation2] sm:$0xff] %v313
        %316 = vst [vmem:[#allocation2 + $0x8] sm:$0xff] %v314
        %317 = vrot.lane.b32.xlu0 %v278, 16
        %v318 = vpop.permute.xlu0 %317
        %319 = vrot.lane.b32.xlu0 %v277, 16
        %v320 = vpop.permute.xlu0 %319
        %vm321 = vcmask 130048
        %v322 = vsel %vm321, %v320, %v318
        %vm324 = vcmask 130048
        %v327 = vsel %vm324, %v318, %v320
        %v329 = vld [vmem:[%s1] sm:$0x11]
        %v331 = vunpack.c.l.b16 %v329
        %v332 = vunpack.c.h.b16 %v329
        %v333 = vpack.c.b16 %v331, %v331
        %v334 = vpack.c.b16 %v332, %v332
        %v336 = vshrl.u32 %v333, 16
        %v337 = vpack.i.b16 %v336, %v336
        %v339 = vlaneseq
        %v340 = vshrl.u32 %v339, 7
        %v341 = vsub.s32 0, %v340
        %v342 = vrot.slane %v337, %v341
        %v344 = vshrl.u32 %v334, 16
        %v345 = vpack.i.b16 %v344, %v344
        %v347 = vlaneseq
        %v348 = vshrl.u32 %v347, 7
        %v349 = vsub.s32 0, %v348
        %v350 = vrot.slane %v345, %v349
        %v351 = vmul.bf16 %v327, %v342
        %v352 = vmul.bf16 %v322, %v350
        %353 = vst [vmem:[#allocation2 + $0x10] sm:$0xff] %v351
        %354 = vst [vmem:[#allocation2 + $0x18] sm:$0xff] %v352
        %355 = vrot.lane.b32.xlu0 %v278, 15
        %v356 = vpop.permute.xlu0 %355
        %357 = vrot.lane.b32.xlu0 %v277, 15
        %v358 = vpop.permute.xlu0 %357
        %vm359 = vcmask 121856
        %v360 = vsel %vm359, %v358, %v356
        %vm362 = vcmask 121856
        %v365 = vsel %vm362, %v356, %v358
        %v367 = vld [vmem:[%s1] sm:$0x22]
        %v369 = vunpack.c.l.b16 %v367
        %v370 = vunpack.c.h.b16 %v367
        %v371 = vpack.c.b16 %v369, %v369
        %v372 = vpack.c.b16 %v370, %v370
        %v374 = vpack.i.b16 %v371, %v371
        %v376 = vlaneseq
        %v377 = vshrl.u32 %v376, 7
        %v378 = vsub.s32 1, %v377
        %v379 = vrot.slane %v374, %v378
        %v381 = vpack.i.b16 %v372, %v372
        %v383 = vlaneseq
        %v384 = vshrl.u32 %v383, 7
        %v385 = vsub.s32 1, %v384
        %v386 = vrot.slane %v381, %v385
        %v387 = vmul.bf16 %v365, %v379
        %v388 = vmul.bf16 %v360, %v386
        %389 = vst [vmem:[#allocation2 + $0x20] sm:$0xff] %v387
        %390 = vst [vmem:[#allocation2 + $0x28] sm:$0xff] %v388
        %391 = vrot.lane.b32.xlu0 %v278, 1
        %v392 = vpop.permute.xlu0 %391
        %393 = vrot.lane.b32.xlu0 %v277, 1
        %v394 = vpop.permute.xlu0 %393
        %vm395 = vcmask 7168
        %v396 = vsel %vm395, %v394, %v392
        %vm398 = vcmask 7168
        %v401 = vsel %vm398, %v392, %v394
        %v403 = vld [vmem:[%s1] sm:$0x22]
        %v405 = vunpack.c.l.b16 %v403
        %v406 = vunpack.c.h.b16 %v403
        %v407 = vpack.c.b16 %v405, %v405
        %v408 = vpack.c.b16 %v406, %v406
        %v410 = vshrl.u32 %v407, 16
        %v411 = vpack.i.b16 %v410, %v410
        %v413 = vlaneseq
        %v414 = vshrl.u32 %v413, 7
        %v415 = vsub.s32 1, %v414
        %v416 = vrot.slane %v411, %v415
        %v418 = vshrl.u32 %v408, 16
        %v419 = vpack.i.b16 %v418, %v418
        %v421 = vlaneseq
        %v422 = vshrl.u32 %v421, 7
        %v423 = vsub.s32 1, %v422
        %v424 = vrot.slane %v419, %v423
        %v425 = vmul.bf16 %v401, %v416
        %v426 = vmul.bf16 %v396, %v424
        %427 = vst [vmem:[#allocation2 + $0x30] sm:$0xff] %v425
        %428 = vst [vmem:[#allocation2 + $0x38] sm:$0xff] %v426
        %429 = vst [vmem:[#allocation2 + $0x40] sm:$0xff] %v277
        %430 = vst [vmem:[#allocation2 + $0x48] sm:$0xff] %v278
        %431 = vrot.lane.b32.xlu0 %v277, 127
        %v432 = vpop.permute.xlu0 %431
        %433 = vrot.lane.b32.xlu0 %v278, 127
        %v434 = vpop.permute.xlu0 %433
        %vm435 = vcmask 1039360
        %v436 = vsel %vm435, %v432, %v434
        %vm438 = vcmask 1039360
        %v441 = vsel %vm438, %v434, %v432
        %v443 = vld [vmem:[%s1] sm:$0x44]
        %v445 = vunpack.c.l.b16 %v443
        %v446 = vunpack.c.h.b16 %v443
        %v447 = vpack.c.b16 %v445, %v445
        %v448 = vpack.c.b16 %v446, %v446
        %v450 = vshrl.u32 %v447, 16
        %v451 = vpack.i.b16 %v450, %v450
        %v453 = vlaneseq
        %v454 = vshrl.u32 %v453, 7
        %v455 = vsub.s32 2, %v454
        %v456 = vrot.slane %v451, %v455
        %v458 = vshrl.u32 %v448, 16
        %v459 = vpack.i.b16 %v458, %v458
        %v461 = vlaneseq
        %v462 = vshrl.u32 %v461, 7
        %v463 = vsub.s32 2, %v462
        %v464 = vrot.slane %v459, %v463
        %v465 = vmul.bf16 %v436, %v456
        %v466 = vmul.bf16 %v441, %v464
        %467 = vst [vmem:[#allocation2 + $0x50] sm:$0xff] %v465
        %468 = vst [vmem:[#allocation2 + $0x58] sm:$0xff] %v466
        %469 = vrot.lane.b32.xlu0 %v277, 113
        %v470 = vpop.permute.xlu0 %469
        %471 = vrot.lane.b32.xlu0 %v278, 113
        %v472 = vpop.permute.xlu0 %471
        %vm473 = vcmask 924672
        %v474 = vsel %vm473, %v470, %v472
        %vm476 = vcmask 924672
        %v479 = vsel %vm476, %v472, %v470
        %v481 = vld [vmem:[%s1] sm:$0x88]
        %v483 = vunpack.c.l.b16 %v481
        %v484 = vunpack.c.h.b16 %v481
        %v485 = vpack.c.b16 %v483, %v483
        %v486 = vpack.c.b16 %v484, %v484
        %v488 = vpack.i.b16 %v485, %v485
        %v490 = vlaneseq
        %v491 = vshrl.u32 %v490, 7
        %v492 = vsub.s32 3, %v491
        %v493 = vrot.slane %v488, %v492
        %v495 = vpack.i.b16 %v486, %v486
        %v497 = vlaneseq
        %v498 = vshrl.u32 %v497, 7
        %v499 = vsub.s32 3, %v498
        %v500 = vrot.slane %v495, %v499
        %v501 = vmul.bf16 %v474, %v493
        %v502 = vmul.bf16 %v479, %v500
        %503 = vst [vmem:[#allocation2 + $0x60] sm:$0xff] %v501
        %504 = vst [vmem:[#allocation2 + $0x68] sm:$0xff] %v502
        %505 = vrot.lane.b32.xlu0 %v277, 112
        %v506 = vpop.permute.xlu0 %505
        %507 = vrot.lane.b32.xlu0 %v278, 112
        %v508 = vpop.permute.xlu0 %507
        %vm509 = vcmask 916480
        %v510 = vsel %vm509, %v506, %v508
        %vm512 = vcmask 916480
        %v515 = vsel %vm512, %v508, %v506
        %v517 = vld [vmem:[%s1] sm:$0x88]
        %v519 = vunpack.c.l.b16 %v517
        %v520 = vunpack.c.h.b16 %v517
        %v521 = vpack.c.b16 %v519, %v519
        %v522 = vpack.c.b16 %v520, %v520
        %v524 = vshrl.u32 %v521, 16
        %v525 = vpack.i.b16 %v524, %v524
        %v527 = vlaneseq
        %v528 = vshrl.u32 %v527, 7
        %v529 = vsub.s32 3, %v528
        %v530 = vrot.slane %v525, %v529
        %v532 = vshrl.u32 %v522, 16
        %v533 = vpack.i.b16 %v532, %v532
        %v535 = vlaneseq
        %v536 = vshrl.u32 %v535, 7
        %v537 = vsub.s32 3, %v536
        %v538 = vrot.slane %v533, %v537
        %v539 = vmul.bf16 %v510, %v530
        %v540 = vmul.bf16 %v515, %v538
        %541 = vst [vmem:[#allocation2 + $0x70] sm:$0xff] %v539
        %542 = vst [vmem:[#allocation2 + $0x78] sm:$0xff] %v540
        %543 = vrot.lane.b32.xlu0 %v277, 111
        %v544 = vpop.permute.xlu0 %543
        %545 = vrot.lane.b32.xlu0 %v278, 111
        %v546 = vpop.permute.xlu0 %545
        %vm547 = vcmask 908288
        %v548 = vsel %vm547, %v544, %v546
        %vm550 = vcmask 908288
        %v553 = vsel %vm550, %v546, %v544
        %v555 = vld [vmem:[%s1 + $0x8] sm:$0x11]
        %v557 = vunpack.c.l.b16 %v555
        %v558 = vunpack.c.h.b16 %v555
        %v559 = vpack.c.b16 %v557, %v557
        %v560 = vpack.c.b16 %v558, %v558
        %v562 = vpack.i.b16 %v559, %v559
        %v564 = vlaneseq
        %v565 = vshrl.u32 %v564, 7
        %v566 = vsub.s32 0, %v565
        %v567 = vrot.slane %v562, %v566
        %v569 = vpack.i.b16 %v560, %v560
        %v571 = vlaneseq
        %v572 = vshrl.u32 %v571, 7
        %v573 = vsub.s32 0, %v572
        %v574 = vrot.slane %v569, %v573
        %v575 = vmul.bf16 %v548, %v567
        %v576 = vmul.bf16 %v553, %v574
        %577 = vst [vmem:[#allocation2 + $0x80] sm:$0xff] %v575
        %578 = vst [vmem:[#allocation2 + $0x88] sm:$0xff] %v576
        %v579 = vld [vmem:[%s2] sm:$0xff]
        %v580 = vld [vmem:[%s2 + $0x8] sm:$0xff]
        %v581 = vld [vmem:[#allocation2] sm:$0xff]
        %v582 = vld [vmem:[#allocation2 + $0x8] sm:$0xff]
        %v583 = vld [vmem:[#allocation2 + $0x10] sm:$0xff]
        %v584 = vld [vmem:[#allocation2 + $0x18] sm:$0xff]
        %v585 = vld [vmem:[#allocation2 + $0x20] sm:$0xff]
        %v586 = vld [vmem:[#allocation2 + $0x28] sm:$0xff]
        %v587 = vld [vmem:[#allocation2 + $0x30] sm:$0xff]
        %v588 = vld [vmem:[#allocation2 + $0x38] sm:$0xff]
        %v589 = vld [vmem:[#allocation2 + $0x40] sm:$0xff]
        %v590 = vld [vmem:[#allocation2 + $0x48] sm:$0xff]
        %v591 = vld [vmem:[#allocation2 + $0x50] sm:$0xff]
        %v592 = vld [vmem:[#allocation2 + $0x58] sm:$0xff]
        %v593 = vld [vmem:[#allocation2 + $0x60] sm:$0xff]
        %v594 = vld [vmem:[#allocation2 + $0x68] sm:$0xff]
        %v595 = vld [vmem:[#allocation2 + $0x70] sm:$0xff]
        %v596 = vld [vmem:[#allocation2 + $0x78] sm:$0xff]
        %v597 = vld [vmem:[#allocation2 + $0x80] sm:$0xff]
        %v598 = vld [vmem:[#allocation2 + $0x88] sm:$0xff]
        %v601 = vunpack.c.l.b16 %v579
        %v602 = vunpack.c.h.b16 %v579
        %v603 = vunpack.c.l.b16 %v580
        %v604 = vunpack.c.h.b16 %v580
        %v605 = vpack.c.b16 %v603, %v601
        %v606 = vpack.c.b16 %v604, %v602
        %v609 = vsel %vm324, %v606, 0
        %611 = vmatprep.subr.bf16.mxu0 %v582
        %612 = vmatpush1.bf16.msra.mxu0 %v581
        %613 = vmatprep.subr.bf16.mxu0 %v584
        %614 = vmatpush1.bf16.msra.mxu0 %v583
        %615 = vmatprep.subr.bf16.mxu0 %v586
        %616 = vmatpush1.bf16.msra.mxu0 %v585
        %617 = vmatprep.subr.bf16.mxu0 %v588
        %618 = vmatpush1.bf16.msra.mxu0 %v587
        %619 = vmatprep.subr.bf16.mxu0 %v590
        %620 = vmatpush1.bf16.msra.mxu0 %v589
        %621 = vmatprep.subr.bf16.mxu0 %v592
        %622 = vmatpush1.bf16.msra.mxu0 %v591
        %623 = vmatprep.subr.bf16.mxu0 %v594
        %624 = vmatpush1.bf16.msra.mxu0 %v593
        %625 = vmatprep.subr.bf16.mxu0 %v596
        %626 = vmatpush1.bf16.msra.mxu0 %v595
        %627 = vmatprep.subr.bf16.mxu0 %v598
        %628 = vmatpush1.bf16.msra.mxu0 %v597
        %629 = vmatprep.subr.bf16.mxu0 0
        %630 = vmatpush1.bf16.msra.mxu0 0
        %631 = vmatprep.subr.bf16.mxu0 0
        %632 = vmatpush1.bf16.msra.mxu0 0
        %633 = vmatprep.subr.bf16.mxu0 0
        %634 = vmatpush1.bf16.msra.mxu0 0
        %635 = vmatprep.subr.bf16.mxu0 0
        %636 = vmatpush1.bf16.msra.mxu0 0
        %637 = vmatprep.subr.bf16.mxu0 0
        %638 = vmatpush1.bf16.msra.mxu0 0
        %639 = vmatprep.subr.bf16.mxu0 0
        %640 = vmatpush1.bf16.msra.mxu0 0
        %641 = vmatprep.subr.bf16.mxu0 0
        %642 = vmatpush1.bf16.msra.mxu0 0
        %643 = vmatprep.mubr.bf16.mxu0 %v609
        %644 = vmatmul.mubr.bf16.gmra.mrb[0].mxu0 %v605
        %v645 = vpop.f32.mrb[0].mxu0
        %v646 = vadd.f32 0.0, %v645
        %v647 = vpop.f32.mrb[0].mxu0
        %v648 = vadd.f32 0.0, %v647
        %v649 = vpop.f32.mrb[0].mxu0
        %v650 = vadd.f32 0.0, %v649
        %v651 = vpop.f32.mrb[0].mxu0
        %v652 = vadd.f32 0.0, %v651
        %653 = vdwg.mxu0
        %654 = vst [vmem:[%s245] sm:$0xff] %v646
        %655 = vst [vmem:[%s245 + $0x8] sm:$0xff] %v648
        %656 = vst [vmem:[%s245 + $0x10] sm:$0xff] %v650
        %657 = vst [vmem:[%s245 + $0x18] sm:$0xff] %v652
        %v658 = vadd.f32 %v646, %v648
        %659 = vadd.xlane.f32.xlu0 %v658
        %v660 = vpop.xlane.xlu0 %659
        %v661 = vadd.f32 %v650, %v652
        %662 = vadd.xlane.f32.xlu0 %v661
        %v663 = vpop.xlane.xlu0 %662
        %664 = vst.msk [vmem:[%s266] sm:$0xff] %vm398, %v660
        %665 = vst.msk [vmem:[%s266 + $0x8] sm:$0xff] %vm398, %v663
        %v666 = vmul.f32 %v646, %v646
        %v667 = vmul.f32 %v648, %v648
        %v668 = vmul.f32 %v650, %v650
        %v669 = vmul.f32 %v652, %v652
        %v670 = vadd.f32 %v666, %v667
        %671 = vadd.xlane.f32.xlu0 %v670
        %v672 = vpop.xlane.xlu0 %671
        %v673 = vadd.f32 %v668, %v669
        %674 = vadd.xlane.f32.xlu0 %v673
        %v675 = vpop.xlane.xlu0 %674
        %676 = vst.msk [vmem:[%s271] sm:$0xff] %vm398, %v672
        %677 = vst.msk [vmem:[%s271 + $0x8] sm:$0xff] %vm398, %v675
        %s678 = sand.u32 %s93, 1
        %s679 = sand.u32 %s93, 1
        %s680 = smul.addr %s679, 32
        %s681 = scalar_lea.vmem [#allocation4], %s680
        %p682 = scmp.lt.s32.totalorder %s17, 1
        %s683 = scalar_select %p682, %s17, 1
        %s684 = smul.addr %s683, 2
        %s685 = smul.addr %s684, 8
        %s686 = scalar_lea.vmem %s4, %s685
        %p687 = scmp.lt.s32.totalorder %s17, 1
        %s688 = scalar_select %p687, %s17, 1
        %s689 = smul.addr %s688, 2
        %s690 = smul.addr %s689, 8
        %s691 = scalar_lea.vmem %s5, %s690
        // Predicated region
        $region56: #{_forward.3} parent=50 // pred_check
          %p692 = pneg %p103
        $region57: #{_forward.3} parent=50 // pred_check_branch
          %694 = sbr.rel (%p692) target = $region59
        $region58: #{_forward.3} parent=50 // pred_region
          %s695 = smul.u32 2, %s17
          %s696 = smul.addr %s695, 8
          %s697 = scalar_lea.vmem %s3, %s696
          // Predicated region
          $region60: #{_forward.3} parent=58 // pred_check
            _
          $region61: #{_forward.3} parent=58 // pred_check_branch
            %699 = sbr.rel (0) target = $region63
          $region62: #{_forward.3} parent=58 // pred_region
            // Predicated region
            $region64: #{_forward.3} parent=62 // pred_check
              _
            $region65: #{_forward.3} parent=62 // pred_check_branch
              %701 = sbr.rel (0) target = $region67
            $region66: #{_forward.3} parent=62 // pred_region
              loop: start=0, step=1, limit=1
              $region68: #{_forward.3} parent=66 // loop_pre_header
                _
              $region69: #{_forward.3} parent=66 // loop_header
                %s703 = sphi 0, %s707
                %p704 = scmp.ge.s32.totalorder %s703, 1
                %s708 = sphi %s681, %s681
                %s709 = sphi %s697, %s697
              $region70: #{_forward.3} parent=66 // loop_header_branch
                %706 = sbr.rel (%p704) target = $region74
              $region71: #{_forward.3} parent=66 // loop_body
                %v710 = vld [vmem:[%s708] sm:$0xff]
                %711 = vst [vmem:[%s709] sm:$0xff] %v710
                %v712 = vld [vmem:[%s708 + $0x8] sm:$0xff]
                %713 = vst [vmem:[%s709 + $0x8] sm:$0xff] %v712
                %v714 = vld [vmem:[%s708 + $0x10] sm:$0xff]
                %715 = vst [vmem:[%s709 + $0x20] sm:$0xff] %v714
                %v716 = vld [vmem:[%s708 + $0x18] sm:$0xff]
                %717 = vst [vmem:[%s709 + $0x28] sm:$0xff] %v716
              $region72: #{_forward.3} parent=66 // loop_footer
                %s707 = sadd.s32 1, %s703
              $region73: #{_forward.3} parent=66 // loop_footer_branch
                %702 = sbr.rel target = $region69
              $region74: #{_forward.3} parent=66 // loop_exit
                _
            $region67: #{_forward.3} parent=62 // pred_fallthru
              _
            // Predicated region
            $region75: #{_forward.3} parent=62 // pred_check
              _
            $region76: #{_forward.3} parent=62 // pred_check_branch
              %719 = sbr.rel target = $region78
            $region77: #{_forward.3} parent=62 // pred_region
              _
            $region78: #{_forward.3} parent=62 // pred_fallthru
              _
          $region63: #{_forward.3} parent=58 // pred_fallthru
            _
          %720 = vnop
        $region59: #{_forward.3} parent=50 // pred_fallthru
          _
        // Predicated region
        $region79: #{_forward.3} parent=50 // pred_check
          %p721 = pneg %p129
        $region80: #{_forward.3} parent=50 // pred_check_branch
          %723 = sbr.rel (%p721) target = $region82
        $region81: #{_forward.3} parent=50 // pred_region
          _
        $region82: #{_forward.3} parent=50 // pred_fallthru
          _
        // Predicated region
        $region83: #{_forward.3} parent=50 // pred_check
          %p724 = pneg %p155
        $region84: #{_forward.3} parent=50 // pred_check_branch
          %726 = sbr.rel (%p724) target = $region86
        $region85: #{_forward.3} parent=50 // pred_region
          _
        $region86: #{_forward.3} parent=50 // pred_fallthru
          _
      $region51: #{_forward.3} parent=5 // pred_fallthru
        _
      %p727 = scmp.le.s32.totalorder 2, %s12
      // Predicated region
      $region87: #{_forward.3} parent=5 // pred_check
        %p728 = pneg %p727
      $region88: #{_forward.3} parent=5 // pred_check_branch
        %730 = sbr.rel (%p728) target = $region90
      $region89: #{_forward.3} parent=5 // pred_region
        %s731 = ssub.s32 %s12, 2
        // Predicated region
        $region91: #{_forward.3} parent=89 // pred_check
          %p732 = pneg %p109
        $region92: #{_forward.3} parent=89 // pred_check_branch
          %734 = sbr.rel (%p732) target = $region94
        $region93: #{_forward.3} parent=89 // pred_region
          %s735 = sand.u32 %s94, 1
          %s736 = sand.u32 %s94, 1
          %s737 = smul.addr %s736, 32
          %s738 = scalar_lea.vmem [#allocation4], %s737
        $region94: #{_forward.3} parent=89 // pred_fallthru
          _
        // Predicated region
        $region95: #{_forward.3} parent=89 // pred_check
          %p739 = pneg %p135
        $region96: #{_forward.3} parent=89 // pred_check_branch
          %741 = sbr.rel (%p739) target = $region98
        $region97: #{_forward.3} parent=89 // pred_region
          %p742 = scmp.lt.s32.totalorder %s18, 1
          %s743 = scalar_select %p742, %s18, 1
          %s744 = smul.addr %s743, 2
          %s745 = smul.addr %s744, 8
          %s746 = scalar_lea.vmem %s4, %s745
        $region98: #{_forward.3} parent=89 // pred_fallthru
          _
        // Predicated region
        $region99: #{_forward.3} parent=89 // pred_check
          %p747 = pneg %p161
        $region100: #{_forward.3} parent=89 // pred_check_branch
          %749 = sbr.rel (%p747) target = $region102
        $region101: #{_forward.3} parent=89 // pred_region
          %p750 = scmp.lt.s32.totalorder %s18, 1
          %s751 = scalar_select %p750, %s18, 1
          %s752 = smul.addr %s751, 2
          %s753 = smul.addr %s752, 8
          %s754 = scalar_lea.vmem %s5, %s753
        $region102: #{_forward.3} parent=89 // pred_fallthru
          _
      $region90: #{_forward.3} parent=5 // pred_fallthru
        _
    $region6: #{_forward.3} parent=1 // loop_footer
      %s16 = sadd.s32 1, %s12
    $region7: #{_forward.3} parent=1 // loop_footer_branch
      %11 = sbr.rel target = $region3
    $region8: #{_forward.3} parent=1 // loop_exit
      _

// kernel: _forward.5
$region0: #{_forward.5}
  #allocation0 [shape = 'u32[]', space=smem, size = 0x4, offset = 0x4, fixed_abs, tag = 'smem constant byte address 0x4 - core index']
  #allocation1 [shape = 'u32[144,128]{1,0:T(1,128)}', space=vmem, size = 0x12000, scoped, tag = 'internal scratch']
  %s0 = inlined_call_operand.vmem [shape: f32[16,512], index: 0, kind: input, shape index: {}]
  %s1 = inlined_call_operand.vmem [shape: f32[16,512], index: 1, kind: input, shape index: {}]
  %s2 = inlined_call_operand.vmem [shape: f32[16,1], index: 2, kind: input, shape index: {}]
  %s3 = inlined_call_operand.vmem [shape: f32[16,1], index: 3, kind: input, shape index: {}]
  %s4 = inlined_call_operand.vmem [shape: f32[16,512], index: 4, kind: output, shape index: {}]
  %s5 = sld [smem:[#allocation0]]
  $region114: #{_forward.5} parent=0
    _
  %s7 = ssub.s32 1, %s5
  %s8 = scalar_select 0, %s7, %s5
  $region1: #{_forward.5} parent=0
    #allocation2 [shape = 'u8[32768]{0}', space=vmem, size = 0x8000, scoped, tag = 'input window, operand 0']
    #allocation3 [shape = 'u8[32768]{0}', space=vmem, size = 0x8000, scoped, tag = 'input window, operand 1']
    #allocation4 [shape = 'u8[32768]{0}', space=vmem, size = 0x8000, scoped, tag = 'output window, operand 0']
    loop: start=0, step=1, limit=4
    $region2: #{_forward.5} parent=1 // loop_pre_header
      _
    $region3: #{_forward.5} parent=1 // loop_header
      %s10 = sphi 0, %s14
      %p11 = scmp.ge.s32.totalorder %s10, 4
      %s20 = sphi 0, %s22
      %s23 = sphi 0, %s20
      %s24 = sphi 0, %s23
      %s40 = sphi 0, %s24
      %s46 = sphi 0, %s48
      %s49 = sphi 0, %s46
      %s50 = sphi 0, %s49
      %s66 = sphi 0, %s50
      %s70 = sphi 0, %s70
      %s72 = sphi 0, %s70
      %s73 = sphi 0, %s72
      %s87 = sphi 0, %s73
      %s91 = sphi 0, %s91
      %s93 = sphi 0, %s91
      %s94 = sphi 0, %s93
      %s108 = sphi 0, %s94
      %s114 = sphi 0, %s116
      %s117 = sphi 0, %s114
      %s118 = sphi 0, %s117
      %s134 = sphi 0, %s118
    $region4: #{_forward.5} parent=1 // loop_header_branch
      %13 = sbr.rel (%p11) target = $region8
    $region5: #{_forward.5} parent=1 // loop_body
      %s15 = ssub.s32 %s10, 1
      %s16 = ssub.s32 %s10, 2
      %s17 = sadd.s32 %s10, 1
      %s18 = ssub.s32 %s10, %s17
      %p19 = scmp.eq.s32.totalorder %s18, 0
      %s21 = sadd.s32 %s20, 1
      %s22 = scalar_select %p19, %s20, %s21
      %p25 = pneg %p19
      %p26 = scmp.eq.s32.totalorder %s10, 1
      %p27 = por %p25, %p26
      %p28 = scmp.ne.s32.totalorder %s20, %s23
      %p29 = scmp.eq.s32.totalorder %s10, 0
      %p30 = por %p28, %p29
      %p31 = scmp.ne.s32.totalorder %s20, %s23
      %p32 = scmp.eq.s32.totalorder %s15, 1
      %p33 = por %p31, %p32
      %p34 = scmp.ne.s32.totalorder %s23, %s24
      %p35 = scmp.eq.s32.totalorder %s15, 0
      %p36 = por %p34, %p35
      %p37 = scmp.ne.s32.totalorder %s23, %s24
      %p38 = scmp.eq.s32.totalorder %s16, 1
      %p39 = por %p37, %p38
      %p41 = scmp.ne.s32.totalorder %s24, %s40
      %p42 = scmp.eq.s32.totalorder %s16, 0
      %p43 = por %p41, %p42
      %s44 = ssub.s32 %s10, %s17
      %p45 = scmp.eq.s32.totalorder %s44, 0
      %s47 = sadd.s32 %s46, 1
      %s48 = scalar_select %p45, %s46, %s47
      %p51 = pneg %p45
      %p52 = scmp.eq.s32.totalorder %s10, 1
      %p53 = por %p51, %p52
      %p54 = scmp.ne.s32.totalorder %s46, %s49
      %p55 = scmp.eq.s32.totalorder %s10, 0
      %p56 = por %p54, %p55
      %p57 = scmp.ne.s32.totalorder %s46, %s49
      %p58 = scmp.eq.s32.totalorder %s15, 1
      %p59 = por %p57, %p58
      %p60 = scmp.ne.s32.totalorder %s49, %s50
      %p61 = scmp.eq.s32.totalorder %s15, 0
      %p62 = por %p60, %p61
      %p63 = scmp.ne.s32.totalorder %s49, %s50
      %p64 = scmp.eq.s32.totalorder %s16, 1
      %p65 = por %p63, %p64
      %p67 = scmp.ne.s32.totalorder %s50, %s66
      %p68 = scmp.eq.s32.totalorder %s16, 0
      %p69 = por %p67, %p68
      %s71 = sadd.s32 %s70, 1
      %p74 = scmp.eq.s32.totalorder %s10, 1
      %p75 = scmp.ne.s32.totalorder %s70, %s72
      %p76 = scmp.eq.s32.totalorder %s10, 0
      %p77 = por %p75, %p76
      %p78 = scmp.ne.s32.totalorder %s70, %s72
      %p79 = scmp.eq.s32.totalorder %s15, 1
      %p80 = por %p78, %p79
      %p81 = scmp.ne.s32.totalorder %s72, %s73
      %p82 = scmp.eq.s32.totalorder %s15, 0
      %p83 = por %p81, %p82
      %p84 = scmp.ne.s32.totalorder %s72, %s73
      %p85 = scmp.eq.s32.totalorder %s16, 1
      %p86 = por %p84, %p85
      %p88 = scmp.ne.s32.totalorder %s73, %s87
      %p89 = scmp.eq.s32.totalorder %s16, 0
      %p90 = por %p88, %p89
      %s92 = sadd.s32 %s91, 1
      %p95 = scmp.eq.s32.totalorder %s10, 1
      %p96 = scmp.ne.s32.totalorder %s91, %s93
      %p97 = scmp.eq.s32.totalorder %s10, 0
      %p98 = por %p96, %p97
      %p99 = scmp.ne.s32.totalorder %s91, %s93
      %p100 = scmp.eq.s32.totalorder %s15, 1
      %p101 = por %p99, %p100
      %p102 = scmp.ne.s32.totalorder %s93, %s94
      %p103 = scmp.eq.s32.totalorder %s15, 0
      %p104 = por %p102, %p103
      %p105 = scmp.ne.s32.totalorder %s93, %s94
      %p106 = scmp.eq.s32.totalorder %s16, 1
      %p107 = por %p105, %p106
      %p109 = scmp.ne.s32.totalorder %s94, %s108
      %p110 = scmp.eq.s32.totalorder %s16, 0
      %p111 = por %p109, %p110
      %s112 = ssub.s32 %s10, %s17
      %p113 = scmp.eq.s32.totalorder %s112, 0
      %s115 = sadd.s32 %s114, 1
      %s116 = scalar_select %p113, %s114, %s115
      %p119 = pneg %p113
      %p120 = scmp.eq.s32.totalorder %s10, 1
      %p121 = por %p119, %p120
      %p122 = scmp.ne.s32.totalorder %s114, %s117
      %p123 = scmp.eq.s32.totalorder %s10, 0
      %p124 = por %p122, %p123
      %p125 = scmp.ne.s32.totalorder %s114, %s117
      %p126 = scmp.eq.s32.totalorder %s15, 1
      %p127 = por %p125, %p126
      %p128 = scmp.ne.s32.totalorder %s117, %s118
      %p129 = scmp.eq.s32.totalorder %s15, 0
      %p130 = por %p128, %p129
      %p131 = scmp.ne.s32.totalorder %s117, %s118
      %p132 = scmp.eq.s32.totalorder %s16, 1
      %p133 = por %p131, %p132
      %p135 = scmp.ne.s32.totalorder %s118, %s134
      %p136 = scmp.eq.s32.totalorder %s16, 0
      %p137 = por %p135, %p136
      %p138 = scmp.le.s32.totalorder 1, %s10
      %p139 = scmp.lt.s32.totalorder %s10, 3
      %p140 = pnand %p138, %p139
      %p141 = pneg %p140
      // Predicated region
      $region9: #{_forward.5} parent=5 // pred_check
        _
      $region10: #{_forward.5} parent=5 // pred_check_branch
        %143 = sbr.rel (%p140) target = $region12
      $region11: #{_forward.5} parent=5 // pred_region
        %s144 = ssub.s32 %s10, 1
        // Predicated region
        $region13: #{_forward.5} parent=11 // pred_check
          %p145 = pneg %p83
        $region14: #{_forward.5} parent=11 // pred_check_branch
          %147 = sbr.rel (%p145) target = $region16
        $region15: #{_forward.5} parent=11 // pred_region
          _
        $region16: #{_forward.5} parent=11 // pred_fallthru
          _
        // Predicated region
        $region17: #{_forward.5} parent=11 // pred_check
          %p148 = pneg %p104
        $region18: #{_forward.5} parent=11 // pred_check_branch
          %150 = sbr.rel (%p148) target = $region20
        $region19: #{_forward.5} parent=11 // pred_region
          _
        $region20: #{_forward.5} parent=11 // pred_fallthru
          _
      $region12: #{_forward.5} parent=5 // pred_fallthru
        _
      %p151 = scmp.lt.s32.totalorder %s10, 2
      // Predicated region
      $region21: #{_forward.5} parent=5 // pred_check
        %p152 = pneg %p151
      $region22: #{_forward.5} parent=5 // pred_check_branch
        %154 = sbr.rel (%p152) target = $region24
      $region23: #{_forward.5} parent=5 // pred_region
        // Predicated region
        $region25: #{_forward.5} parent=23 // pred_check
          %p155 = pneg %p30
        $region26: #{_forward.5} parent=23 // pred_check_branch
          %157 = sbr.rel (%p155) target = $region28
        $region27: #{_forward.5} parent=23 // pred_region
          %s158 = sand.u32 %s20, 1
          %s159 = sand.u32 %s20, 1
          %s160 = smul.addr %s159, 32
          %s161 = scalar_lea.vmem [#allocation2], %s160
          %s162 = smul.u32 2, %s10
          %s163 = smul.addr %s162, 8
          %s164 = scalar_lea.vmem %s0, %s163
          // Predicated region
          $region29: #{_forward.5} parent=27 // pred_check
            _
          $region30: #{_forward.5} parent=27 // pred_check_branch
            %166 = sbr.rel (0) target = $region32
          $region31: #{_forward.5} parent=27 // pred_region
            // Predicated region
            $region33: #{_forward.5} parent=31 // pred_check
              _
            $region34: #{_forward.5} parent=31 // pred_check_branch
              %168 = sbr.rel (0) target = $region36
            $region35: #{_forward.5} parent=31 // pred_region
              loop: start=0, step=1, limit=1
              $region37: #{_forward.5} parent=35 // loop_pre_header
                _
              $region38: #{_forward.5} parent=35 // loop_header
                %s170 = sphi 0, %s174
                %p171 = scmp.ge.s32.totalorder %s170, 1
                %s175 = sphi %s164, %s164
                %s176 = sphi %s161, %s161
              $region39: #{_forward.5} parent=35 // loop_header_branch
                %173 = sbr.rel (%p171) target = $region43
              $region40: #{_forward.5} parent=35 // loop_body
                %v177 = vld [vmem:[%s175] sm:$0xff]
                %178 = vst [vmem:[%s176] sm:$0xff] %v177
                %v179 = vld [vmem:[%s175 + $0x8] sm:$0xff]
                %180 = vst [vmem:[%s176 + $0x8] sm:$0xff] %v179
                %v181 = vld [vmem:[%s175 + $0x20] sm:$0xff]
                %182 = vst [vmem:[%s176 + $0x10] sm:$0xff] %v181
                %v183 = vld [vmem:[%s175 + $0x28] sm:$0xff]
                %184 = vst [vmem:[%s176 + $0x18] sm:$0xff] %v183
              $region41: #{_forward.5} parent=35 // loop_footer
                %s174 = sadd.s32 1, %s170
              $region42: #{_forward.5} parent=35 // loop_footer_branch
                %169 = sbr.rel target = $region38
              $region43: #{_forward.5} parent=35 // loop_exit
                _
            $region36: #{_forward.5} parent=31 // pred_fallthru
              _
            // Predicated region
            $region44: #{_forward.5} parent=31 // pred_check
              _
            $region45: #{_forward.5} parent=31 // pred_check_branch
              %186 = sbr.rel target = $region47
            $region46: #{_forward.5} parent=31 // pred_region
              _
            $region47: #{_forward.5} parent=31 // pred_fallthru
              _
          $region32: #{_forward.5} parent=27 // pred_fallthru
            _
          %187 = vnop
        $region28: #{_forward.5} parent=23 // pred_fallthru
          _
        // Predicated region
        $region48: #{_forward.5} parent=23 // pred_check
          %p188 = pneg %p56
        $region49: #{_forward.5} parent=23 // pred_check_branch
          %190 = sbr.rel (%p188) target = $region51
        $region50: #{_forward.5} parent=23 // pred_region
          %s191 = sand.u32 %s46, 1
          %s192 = sand.u32 %s46, 1
          %s193 = smul.addr %s192, 32
          %s194 = scalar_lea.vmem [#allocation3], %s193
          %s195 = smul.u32 2, %s10
          %s196 = smul.addr %s195, 8
          %s197 = scalar_lea.vmem %s1, %s196
          // Predicated region
          $region52: #{_forward.5} parent=50 // pred_check
            _
          $region53: #{_forward.5} parent=50 // pred_check_branch
            %199 = sbr.rel (0) target = $region55
          $region54: #{_forward.5} parent=50 // pred_region
            // Predicated region
            $region56: #{_forward.5} parent=54 // pred_check
              _
            $region57: #{_forward.5} parent=54 // pred_check_branch
              %201 = sbr.rel (0) target = $region59
            $region58: #{_forward.5} parent=54 // pred_region
              loop: start=0, step=1, limit=1
              $region60: #{_forward.5} parent=58 // loop_pre_header
                _
              $region61: #{_forward.5} parent=58 // loop_header
                %s203 = sphi 0, %s207
                %p204 = scmp.ge.s32.totalorder %s203, 1
                %s208 = sphi %s197, %s197
                %s209 = sphi %s194, %s194
              $region62: #{_forward.5} parent=58 // loop_header_branch
                %206 = sbr.rel (%p204) target = $region66
              $region63: #{_forward.5} parent=58 // loop_body
                %v210 = vld [vmem:[%s208] sm:$0xff]
                %211 = vst [vmem:[%s209] sm:$0xff] %v210
                %v212 = vld [vmem:[%s208 + $0x8] sm:$0xff]
                %213 = vst [vmem:[%s209 + $0x8] sm:$0xff] %v212
                %v214 = vld [vmem:[%s208 + $0x20] sm:$0xff]
                %215 = vst [vmem:[%s209 + $0x10] sm:$0xff] %v214
                %v216 = vld [vmem:[%s208 + $0x28] sm:$0xff]
                %217 = vst [vmem:[%s209 + $0x18] sm:$0xff] %v216
              $region64: #{_forward.5} parent=58 // loop_footer
                %s207 = sadd.s32 1, %s203
              $region65: #{_forward.5} parent=58 // loop_footer_branch
                %202 = sbr.rel target = $region61
              $region66: #{_forward.5} parent=58 // loop_exit
                _
            $region59: #{_forward.5} parent=54 // pred_fallthru
              _
            // Predicated region
            $region67: #{_forward.5} parent=54 // pred_check
              _
            $region68: #{_forward.5} parent=54 // pred_check_branch
              %219 = sbr.rel target = $region70
            $region69: #{_forward.5} parent=54 // pred_region
              _
            $region70: #{_forward.5} parent=54 // pred_fallthru
              _
          $region55: #{_forward.5} parent=50 // pred_fallthru
            _
          %220 = vnop
        $region51: #{_forward.5} parent=23 // pred_fallthru
          _
      $region24: #{_forward.5} parent=5 // pred_fallthru
        _
      %p221 = scmp.le.s32.totalorder 1, %s10
      %p222 = scmp.lt.s32.totalorder %s10, 3
      %p223 = pnand %p221, %p222
      %p224 = pneg %p223
      // Predicated region
      $region71: #{_forward.5} parent=5 // pred_check
        _
      $region72: #{_forward.5} parent=5 // pred_check_branch
        %226 = sbr.rel (%p223) target = $region74
      $region73: #{_forward.5} parent=5 // pred_region
        %s227 = ssub.s32 %s10, 1
        %s228 = sand.u32 %s23, 1
        %s229 = sand.u32 %s23, 1
        %s230 = smul.addr %s229, 32
        %s231 = scalar_lea.vmem [#allocation2], %s230
        // Predicated region
        $region75: #{_forward.5} parent=73 // pred_check
          %p232 = pneg %p36
        $region76: #{_forward.5} parent=73 // pred_check_branch
          %234 = sbr.rel (%p232) target = $region78
        $region77: #{_forward.5} parent=73 // pred_region
          _
        $region78: #{_forward.5} parent=73 // pred_fallthru
          _
        %s235 = sand.u32 %s49, 1
        %s236 = sand.u32 %s49, 1
        %s237 = smul.addr %s236, 32
        %s238 = scalar_lea.vmem [#allocation3], %s237
        // Predicated region
        $region79: #{_forward.5} parent=73 // pred_check
          %p239 = pneg %p62
        $region80: #{_forward.5} parent=73 // pred_check_branch
          %241 = sbr.rel (%p239) target = $region82
        $region81: #{_forward.5} parent=73 // pred_region
          _
        $region82: #{_forward.5} parent=73 // pred_fallthru
          _
        %s242 = sand.u32 %s23, 1
        %s243 = sand.u32 %s23, 1
        %s244 = smul.addr %s243, 32
        %s245 = scalar_lea.vmem [#allocation2], %s244
        %p246 = pneg %p36
        %p247 = pneg %p33
        %s248 = sand.u32 %s49, 1
        %s249 = sand.u32 %s49, 1
        %s250 = smul.addr %s249, 32
        %s251 = scalar_lea.vmem [#allocation3], %s250
        %p252 = pneg %p62
        %p253 = pneg %p59
        %p254 = pneg %p83
        %p255 = pneg %p80
        %p256 = pneg %p104
        %p257 = pneg %p101
        %p258 = pneg %p130
        %p259 = pneg %p127
        %s260 = sand.u32 %s117, 1
        %s261 = sand.u32 %s117, 1
        %s262 = smul.addr %s261, 32
        %s263 = scalar_lea.vmem [#allocation4], %s262
        %s264 = smul.u32 2, %s15
        %s265 = smul.u32 2, %s15
        %s266 = smul.u32 2, %s15
        %v267 = vld [vmem:[%s231] sm:$0xff]
        %v268 = vld [vmem:[%s231 + $0x8] sm:$0xff]
        %v269 = vld [vmem:[%s231 + $0x10] sm:$0xff]
        %v270 = vld [vmem:[%s231 + $0x18] sm:$0xff]
        %v271 = vld [vmem:[%s2] sm:$0xff]
        %v272 = vld [vmem:[%s2 + $0x8] sm:$0xff]
        %274 = vset.pattern.permute.xlu0 0
        %275 = vperm.xlu0 %274, %v271
        %v276 = vpop.permute.xlu0 %275
        %279 = vset.pattern.permute.xlu0 0
        %280 = vperm.xlu0 %279, %v272
        %v281 = vpop.permute.xlu0 %280
        %v283 = vmul.f32 %v267, %v276
        %v284 = vmul.f32 %v268, %v276
        %v285 = vmul.f32 %v269, %v281
        %v286 = vmul.f32 %v270, %v281
        %v287 = vld [vmem:[%s3] sm:$0xff]
        %v288 = vld [vmem:[%s3 + $0x8] sm:$0xff]
        %290 = vset.pattern.permute.xlu0 0
        %291 = vperm.xlu0 %290, %v287
        %v292 = vpop.permute.xlu0 %291
        %295 = vset.pattern.permute.xlu0 0
        %296 = vperm.xlu0 %295, %v288
        %v297 = vpop.permute.xlu0 %296
        %v299 = vadd.f32 %v283, %v292
        %v300 = vadd.f32 %v284, %v292
        %v301 = vadd.f32 %v285, %v297
        %v302 = vadd.f32 %v286, %v297
        %v303 = vmax.f32 %v299, 0.0
        %v304 = vmax.f32 %v300, 0.0
        %v305 = vmax.f32 %v301, 0.0
        %v306 = vmax.f32 %v302, 0.0
        %v307 = vld [vmem:[%s238] sm:$0xff]
        %v308 = vld [vmem:[%s238 + $0x8] sm:$0xff]
        %v309 = vld [vmem:[%s238 + $0x10] sm:$0xff]
        %v310 = vld [vmem:[%s238 + $0x18] sm:$0xff]
        %v311 = vadd.f32 %v303, %v307
        %v312 = vadd.f32 %v304, %v308
        %v313 = vadd.f32 %v305, %v309
        %v314 = vadd.f32 %v306, %v310
        %v315 = vmax.f32 %v311, 0.0
        %v316 = vmax.f32 %v312, 0.0
        %v317 = vmax.f32 %v313, 0.0
        %v318 = vmax.f32 %v314, 0.0
        %319 = vst [vmem:[%s263] sm:$0xff] %v315
        %320 = vst [vmem:[%s263 + $0x8] sm:$0xff] %v316
        %321 = vst [vmem:[%s263 + $0x10] sm:$0xff] %v317
        %322 = vst [vmem:[%s263 + $0x18] sm:$0xff] %v318
        %s323 = sand.u32 %s117, 1
        %s324 = sand.u32 %s117, 1
        %s325 = smul.addr %s324, 32
        %s326 = scalar_lea.vmem [#allocation4], %s325
        // Predicated region
        $region83: #{_forward.5} parent=73 // pred_check
          %p327 = pneg %p127
        $region84: #{_forward.5} parent=73 // pred_check_branch
          %329 = sbr.rel (%p327) target = $region86
        $region85: #{_forward.5} parent=73 // pred_region
          %s330 = smul.u32 2, %s15
          %s331 = smul.addr %s330, 8
          %s332 = scalar_lea.vmem %s4, %s331
          // Predicated region
          $region87: #{_forward.5} parent=85 // pred_check
            _
          $region88: #{_forward.5} parent=85 // pred_check_branch
            %334 = sbr.rel (0) target = $region90
          $region89: #{_forward.5} parent=85 // pred_region
            // Predicated region
            $region91: #{_forward.5} parent=89 // pred_check
              _
            $region92: #{_forward.5} parent=89 // pred_check_branch
              %336 = sbr.rel (0) target = $region94
            $region93: #{_forward.5} parent=89 // pred_region
              loop: start=0, step=1, limit=1
              $region95: #{_forward.5} parent=93 // loop_pre_header
                _
              $region96: #{_forward.5} parent=93 // loop_header
                %s338 = sphi 0, %s342
                %p339 = scmp.ge.s32.totalorder %s338, 1
                %s343 = sphi %s326, %s326
                %s344 = sphi %s332, %s332
              $region97: #{_forward.5} parent=93 // loop_header_branch
                %341 = sbr.rel (%p339) target = $region101
              $region98: #{_forward.5} parent=93 // loop_body
                %v345 = vld [vmem:[%s343] sm:$0xff]
                %346 = vst [vmem:[%s344] sm:$0xff] %v345
                %v347 = vld [vmem:[%s343 + $0x8] sm:$0xff]
                %348 = vst [vmem:[%s344 + $0x8] sm:$0xff] %v347
                %v349 = vld [vmem:[%s343 + $0x10] sm:$0xff]
                %350 = vst [vmem:[%s344 + $0x20] sm:$0xff] %v349
                %v351 = vld [vmem:[%s343 + $0x18] sm:$0xff]
                %352 = vst [vmem:[%s344 + $0x28] sm:$0xff] %v351
              $region99: #{_forward.5} parent=93 // loop_footer
                %s342 = sadd.s32 1, %s338
              $region100: #{_forward.5} parent=93 // loop_footer_branch
                %337 = sbr.rel target = $region96
              $region101: #{_forward.5} parent=93 // loop_exit
                _
            $region94: #{_forward.5} parent=89 // pred_fallthru
              _
            // Predicated region
            $region102: #{_forward.5} parent=89 // pred_check
              _
            $region103: #{_forward.5} parent=89 // pred_check_branch
              %354 = sbr.rel target = $region105
            $region104: #{_forward.5} parent=89 // pred_region
              _
            $region105: #{_forward.5} parent=89 // pred_fallthru
              _
          $region90: #{_forward.5} parent=85 // pred_fallthru
            _
          %355 = vnop
        $region86: #{_forward.5} parent=73 // pred_fallthru
          _
      $region74: #{_forward.5} parent=5 // pred_fallthru
        _
      %p356 = scmp.le.s32.totalorder 2, %s10
      // Predicated region
      $region106: #{_forward.5} parent=5 // pred_check
        %p357 = pneg %p356
      $region107: #{_forward.5} parent=5 // pred_check_branch
        %359 = sbr.rel (%p357) target = $region109
      $region108: #{_forward.5} parent=5 // pred_region
        %s360 = ssub.s32 %s10, 2
        // Predicated region
        $region110: #{_forward.5} parent=108 // pred_check
          %p361 = pneg %p133
        $region111: #{_forward.5} parent=108 // pred_check_branch
          %363 = sbr.rel (%p361) target = $region113
        $region112: #{_forward.5} parent=108 // pred_region
          %s364 = sand.u32 %s118, 1
          %s365 = sand.u32 %s118, 1
          %s366 = smul.addr %s365, 32
          %s367 = scalar_lea.vmem [#allocation4], %s366
        $region113: #{_forward.5} parent=108 // pred_fallthru
          _
      $region109: #{_forward.5} parent=5 // pred_fallthru
        _
    $region6: #{_forward.5} parent=1 // loop_footer
      %s14 = sadd.s32 1, %s10
    $region7: #{_forward.5} parent=1 // loop_footer_branch
      %9 = sbr.rel target = $region3
    $region8: #{_forward.5} parent=1 // loop_exit
      _

// kernel: _forward.4
$region0: #{_forward.4}
  #allocation0 [shape = 'u32[]', space=smem, size = 0x4, offset = 0x4, fixed_abs, tag = 'smem constant byte address 0x4 - core index']
  #allocation1 [shape = 'u32[144,128]{1,0:T(1,128)}', space=vmem, size = 0x12000, scoped, tag = 'internal scratch']
  #allocation2 [shape = 'bf16[144,256]{1,0:T(16,128)(2,1)}', space=vmem, size = 0x12000, scoped, tag = 'scratch operand']
  %s0 = inlined_call_operand.vmem [shape: f32[16,512], index: 0, kind: input, shape index: {}]
  %s1 = inlined_call_operand.vmem [shape: f32[16,1], index: 1, kind: input, shape index: {}]
  %s2 = inlined_call_operand.vmem [shape: f32[16,1], index: 2, kind: input, shape index: {}]
  %s3 = inlined_call_operand.vmem [shape: bf16[9,256], index: 3, kind: input, shape index: {}]
  %s4 = inlined_call_operand.vmem [shape: bf16[16,144], index: 4, kind: input, shape index: {}]
  %s5 = inlined_call_operand.vmem [shape: f32[16,512], index: 5, kind: output, shape index: {0}]
  %s6 = inlined_call_operand.vmem [shape: f32[2,16,1], index: 6, kind: output, shape index: {1}]
  %s7 = inlined_call_operand.vmem [shape: f32[2,16,1], index: 7, kind: output, shape index: {2}]
  %8 = xla_tuple %s5, %s6, %s7
  %s9 = sld [smem:[#allocation0]]
  $region111: #{_forward.4} parent=0
    _
  %s11 = ssub.s32 1, %s9
  %s12 = scalar_select 0, %s11, %s9
  $region1: #{_forward.4} parent=0
    #allocation3 [shape = 'u8[32768]{0}', space=vmem, size = 0x8000, scoped, tag = 'input window, operand 0']
    #allocation4 [shape = 'u8[32768]{0}', space=vmem, size = 0x8000, scoped, tag = 'output window, operand 0']
    loop: start=0, step=1, limit=4
    $region2: #{_forward.4} parent=1 // loop_pre_header
      _
    $region3: #{_forward.4} parent=1 // loop_header
      %s14 = sphi 0, %s18
      %p15 = scmp.ge.s32.totalorder %s14, 4
      %s24 = sphi 0, %s26
      %s27 = sphi 0, %s24
      %s28 = sphi 0, %s27
      %s44 = sphi 0, %s28
      %s48 = sphi 0, %s48
      %s50 = sphi 0, %s48
      %s51 = sphi 0, %s50
      %s65 = sphi 0, %s51
      %s69 = sphi 0, %s69
      %s71 = sphi 0, %s69
      %s72 = sphi 0, %s71
      %s86 = sphi 0, %s72
      %s90 = sphi 0, %s90
      %s92 = sphi 0, %s90
      %s93 = sphi 0, %s92
      %s107 = sphi 0, %s93
      %s111 = sphi 0, %s111
      %s113 = sphi 0, %s111
      %s114 = sphi 0, %s113
      %s128 = sphi 0, %s114
      %s134 = sphi 0, %s136
      %s137 = sphi 0, %s134
      %s138 = sphi 0, %s137
      %s154 = sphi 0, %s138
      %s160 = sphi 0, %s162
      %s163 = sphi 0, %s160
      %s164 = sphi 0, %s163
      %s180 = sphi 0, %s164
      %s186 = sphi 0, %s188
      %s189 = sphi 0, %s186
      %s190 = sphi 0, %s189
      %s206 = sphi 0, %s190
    $region4: #{_forward.4} parent=1 // loop_header_branch
      %17 = sbr.rel (%p15) target = $region8
    $region5: #{_forward.4} parent=1 // loop_body
      %s19 = ssub.s32 %s14, 1
      %s20 = ssub.s32 %s14, 2
      %s21 = sadd.s32 %s14, 1
      %s22 = ssub.s32 %s14, %s21
      %p23 = scmp.eq.s32.totalorder %s22, 0
      %s25 = sadd.s32 %s24, 1
      %s26 = scalar_select %p23, %s24, %s25
      %p29 = pneg %p23
      %p30 = scmp.eq.s32.totalorder %s14, 1
      %p31 = por %p29, %p30
      %p32 = scmp.ne.s32.totalorder %s24, %s27
      %p33 = scmp.eq.s32.totalorder %s14, 0
      %p34 = por %p32, %p33
      %p35 = scmp.ne.s32.totalorder %s24, %s27
      %p36 = scmp.eq.s32.totalorder %s19, 1
      %p37 = por %p35, %p36
      %p38 = scmp.ne.s32.totalorder %s27, %s28
      %p39 = scmp.eq.s32.totalorder %s19, 0
      %p40 = por %p38, %p39
      %p41 = scmp.ne.s32.totalorder %s27, %s28
      %p42 = scmp.eq.s32.totalorder %s20, 1
      %p43 = por %p41, %p42
      %p45 = scmp.ne.s32.totalorder %s28, %s44
      %p46 = scmp.eq.s32.totalorder %s20, 0
      %p47 = por %p45, %p46
      %s49 = sadd.s32 %s48, 1
      %p52 = scmp.eq.s32.totalorder %s14, 1
      %p53 = scmp.ne.s32.totalorder %s48, %s50
      %p54 = scmp.eq.s32.totalorder %s14, 0
      %p55 = por %p53, %p54
      %p56 = scmp.ne.s32.totalorder %s48, %s50
      %p57 = scmp.eq.s32.totalorder %s19, 1
      %p58 = por %p56, %p57
      %p59 = scmp.ne.s32.totalorder %s50, %s51
      %p60 = scmp.eq.s32.totalorder %s19, 0
      %p61 = por %p59, %p60
      %p62 = scmp.ne.s32.totalorder %s50, %s51
      %p63 = scmp.eq.s32.totalorder %s20, 1
      %p64 = por %p62, %p63
      %p66 = scmp.ne.s32.totalorder %s51, %s65
      %p67 = scmp.eq.s32.totalorder %s20, 0
      %p68 = por %p66, %p67
      %s70 = sadd.s32 %s69, 1
      %p73 = scmp.eq.s32.totalorder %s14, 1
      %p74 = scmp.ne.s32.totalorder %s69, %s71
      %p75 = scmp.eq.s32.totalorder %s14, 0
      %p76 = por %p74, %p75
      %p77 = scmp.ne.s32.totalorder %s69, %s71
      %p78 = scmp.eq.s32.totalorder %s19, 1
      %p79 = por %p77, %p78
      %p80 = scmp.ne.s32.totalorder %s71, %s72
      %p81 = scmp.eq.s32.totalorder %s19, 0
      %p82 = por %p80, %p81
      %p83 = scmp.ne.s32.totalorder %s71, %s72
      %p84 = scmp.eq.s32.totalorder %s20, 1
      %p85 = por %p83, %p84
      %p87 = scmp.ne.s32.totalorder %s72, %s86
      %p88 = scmp.eq.s32.totalorder %s20, 0
      %p89 = por %p87, %p88
      %s91 = sadd.s32 %s90, 1
      %p94 = scmp.eq.s32.totalorder %s14, 1
      %p95 = scmp.ne.s32.totalorder %s90, %s92
      %p96 = scmp.eq.s32.totalorder %s14, 0
      %p97 = por %p95, %p96
      %p98 = scmp.ne.s32.totalorder %s90, %s92
      %p99 = scmp.eq.s32.totalorder %s19, 1
      %p100 = por %p98, %p99
      %p101 = scmp.ne.s32.totalorder %s92, %s93
      %p102 = scmp.eq.s32.totalorder %s19, 0
      %p103 = por %p101, %p102
      %p104 = scmp.ne.s32.totalorder %s92, %s93
      %p105 = scmp.eq.s32.totalorder %s20, 1
      %p106 = por %p104, %p105
      %p108 = scmp.ne.s32.totalorder %s93, %s107
      %p109 = scmp.eq.s32.totalorder %s20, 0
      %p110 = por %p108, %p109
      %s112 = sadd.s32 %s111, 1
      %p115 = scmp.eq.s32.totalorder %s14, 1
      %p116 = scmp.ne.s32.totalorder %s111, %s113
      %p117 = scmp.eq.s32.totalorder %s14, 0
      %p118 = por %p116, %p117
      %p119 = scmp.ne.s32.totalorder %s111, %s113
      %p120 = scmp.eq.s32.totalorder %s19, 1
      %p121 = por %p119, %p120
      %p122 = scmp.ne.s32.totalorder %s113, %s114
      %p123 = scmp.eq.s32.totalorder %s19, 0
      %p124 = por %p122, %p123
      %p125 = scmp.ne.s32.totalorder %s113, %s114
      %p126 = scmp.eq.s32.totalorder %s20, 1
      %p127 = por %p125, %p126
      %p129 = scmp.ne.s32.totalorder %s114, %s128
      %p130 = scmp.eq.s32.totalorder %s20, 0
      %p131 = por %p129, %p130
      %s132 = ssub.s32 %s14, %s21
      %p133 = scmp.eq.s32.totalorder %s132, 0
      %s135 = sadd.s32 %s134, 1
      %s136 = scalar_select %p133, %s134, %s135
      %p139 = pneg %p133
      %p140 = scmp.eq.s32.totalorder %s14, 1
      %p141 = por %p139, %p140
      %p142 = scmp.ne.s32.totalorder %s134, %s137
      %p143 = scmp.eq.s32.totalorder %s14, 0
      %p144 = por %p142, %p143
      %p145 = scmp.ne.s32.totalorder %s134, %s137
      %p146 = scmp.eq.s32.totalorder %s19, 1
      %p147 = por %p145, %p146
      %p148 = scmp.ne.s32.totalorder %s137, %s138
      %p149 = scmp.eq.s32.totalorder %s19, 0
      %p150 = por %p148, %p149
      %p151 = scmp.ne.s32.totalorder %s137, %s138
      %p152 = scmp.eq.s32.totalorder %s20, 1
      %p153 = por %p151, %p152
      %p155 = scmp.ne.s32.totalorder %s138, %s154
      %p156 = scmp.eq.s32.totalorder %s20, 0
      %p157 = por %p155, %p156
      %s158 = ssub.s32 %s14, %s21
      %p159 = scmp.eq.s32.totalorder %s158, 0
      %s161 = sadd.s32 %s160, 1
      %s162 = scalar_select %p159, %s160, %s161
      %p165 = pneg %p159
      %p166 = scmp.eq.s32.totalorder %s14, 1
      %p167 = por %p165, %p166
      %p168 = scmp.ne.s32.totalorder %s160, %s163
      %p169 = scmp.eq.s32.totalorder %s14, 0
      %p170 = por %p168, %p169
      %p171 = scmp.ne.s32.totalorder %s160, %s163
      %p172 = scmp.eq.s32.totalorder %s19, 1
      %p173 = por %p171, %p172
      %p174 = scmp.ne.s32.totalorder %s163, %s164
      %p175 = scmp.eq.s32.totalorder %s19, 0
      %p176 = por %p174, %p175
      %p177 = scmp.ne.s32.totalorder %s163, %s164
      %p178 = scmp.eq.s32.totalorder %s20, 1
      %p179 = por %p177, %p178
      %p181 = scmp.ne.s32.totalorder %s164, %s180
      %p182 = scmp.eq.s32.totalorder %s20, 0
      %p183 = por %p181, %p182
      %s184 = ssub.s32 %s14, %s21
      %p185 = scmp.eq.s32.totalorder %s184, 0
      %s187 = sadd.s32 %s186, 1
      %s188 = scalar_select %p185, %s186, %s187
      %p191 = pneg %p185
      %p192 = scmp.eq.s32.totalorder %s14, 1
      %p193 = por %p191, %p192
      %p194 = scmp.ne.s32.totalorder %s186, %s189
      %p195 = scmp.eq.s32.totalorder %s14, 0
      %p196 = por %p194, %p195
      %p197 = scmp.ne.s32.totalorder %s186, %s189
      %p198 = scmp.eq.s32.totalorder %s19, 1
      %p199 = por %p197, %p198
      %p200 = scmp.ne.s32.totalorder %s189, %s190
      %p201 = scmp.eq.s32.totalorder %s19, 0
      %p202 = por %p200, %p201
      %p203 = scmp.ne.s32.totalorder %s189, %s190
      %p204 = scmp.eq.s32.totalorder %s20, 1
      %p205 = por %p203, %p204
      %p207 = scmp.ne.s32.totalorder %s190, %s206
      %p208 = scmp.eq.s32.totalorder %s20, 0
      %p209 = por %p207, %p208
      %p210 = scmp.le.s32.totalorder 1, %s14
      %p211 = scmp.lt.s32.totalorder %s14, 3
      %p212 = pnand %p210, %p211
      %p213 = pneg %p212
      // Predicated region
      $region9: #{_forward.4} parent=5 // pred_check
        _
      $region10: #{_forward.4} parent=5 // pred_check_branch
        %215 = sbr.rel (%p212) target = $region12
      $region11: #{_forward.4} parent=5 // pred_region
        %s216 = ssub.s32 %s14, 1
        // Predicated region
        $region13: #{_forward.4} parent=11 // pred_check
          %p217 = pneg %p61
        $region14: #{_forward.4} parent=11 // pred_check_branch
          %219 = sbr.rel (%p217) target = $region16
        $region15: #{_forward.4} parent=11 // pred_region
          _
        $region16: #{_forward.4} parent=11 // pred_fallthru
          _
        // Predicated region
        $region17: #{_forward.4} parent=11 // pred_check
          %p220 = pneg %p82
        $region18: #{_forward.4} parent=11 // pred_check_branch
          %222 = sbr.rel (%p220) target = $region20
        $region19: #{_forward.4} parent=11 // pred_region
          _
        $region20: #{_forward.4} parent=11 // pred_fallthru
          _
        // Predicated region
        $region21: #{_forward.4} parent=11 // pred_check
          %p223 = pneg %p103
        $region22: #{_forward.4} parent=11 // pred_check_branch
          %225 = sbr.rel (%p223) target = $region24
        $region23: #{_forward.4} parent=11 // pred_region
          _
        $region24: #{_forward.4} parent=11 // pred_fallthru
          _
        // Predicated region
        $region25: #{_forward.4} parent=11 // pred_check
          %p226 = pneg %p124
        $region26: #{_forward.4} parent=11 // pred_check_branch
          %228 = sbr.rel (%p226) target = $region28
        $region27: #{_forward.4} parent=11 // pred_region
          _
        $region28: #{_forward.4} parent=11 // pred_fallthru
          _
      $region12: #{_forward.4} parent=5 // pred_fallthru
        _
      %p229 = scmp.lt.s32.totalorder %s14, 2
      // Predicated region
      $region29: #{_forward.4} parent=5 // pred_check
        %p230 = pneg %p229
      $region30: #{_forward.4} parent=5 // pred_check_branch
        %232 = sbr.rel (%p230) target = $region32
      $region31: #{_forward.4} parent=5 // pred_region
        // Predicated region
        $region33: #{_forward.4} parent=31 // pred_check
          %p233 = pneg %p34
        $region34: #{_forward.4} parent=31 // pred_check_branch
          %235 = sbr.rel (%p233) target = $region36
        $region35: #{_forward.4} parent=31 // pred_region
          %s236 = sand.u32 %s24, 1
          %s237 = sand.u32 %s24, 1
          %s238 = smul.addr %s237, 32
          %s239 = scalar_lea.vmem [#allocation3], %s238
          %s240 = smul.u32 2, %s14
          %s241 = smul.addr %s240, 8
          %s242 = scalar_lea.vmem %s0, %s241
          // Predicated region
          $region37: #{_forward.4} parent=35 // pred_check
            _
          $region38: #{_forward.4} parent=35 // pred_check_branch
            %244 = sbr.rel (0) target = $region40
          $region39: #{_forward.4} parent=35 // pred_region
            // Predicated region
            $region41: #{_forward.4} parent=39 // pred_check
              _
            $region42: #{_forward.4} parent=39 // pred_check_branch
              %246 = sbr.rel (0) target = $region44
            $region43: #{_forward.4} parent=39 // pred_region
              loop: start=0, step=1, limit=1
              $region45: #{_forward.4} parent=43 // loop_pre_header
                _
              $region46: #{_forward.4} parent=43 // loop_header
                %s248 = sphi 0, %s252
                %p249 = scmp.ge.s32.totalorder %s248, 1
                %s253 = sphi %s242, %s242
                %s254 = sphi %s239, %s239
              $region47: #{_forward.4} parent=43 // loop_header_branch
                %251 = sbr.rel (%p249) target = $region51
              $region48: #{_forward.4} parent=43 // loop_body
                %v255 = vld [vmem:[%s253] sm:$0xff]
                %256 = vst [vmem:[%s254] sm:$0xff] %v255
                %v257 = vld [vmem:[%s253 + $0x8] sm:$0xff]
                %258 = vst [vmem:[%s254 + $0x8] sm:$0xff] %v257
                %v259 = vld [vmem:[%s253 + $0x20] sm:$0xff]
                %260 = vst [vmem:[%s254 + $0x10] sm:$0xff] %v259
                %v261 = vld [vmem:[%s253 + $0x28] sm:$0xff]
                %262 = vst [vmem:[%s254 + $0x18] sm:$0xff] %v261
              $region49: #{_forward.4} parent=43 // loop_footer
                %s252 = sadd.s32 1, %s248
              $region50: #{_forward.4} parent=43 // loop_footer_branch
                %247 = sbr.rel target = $region46
              $region51: #{_forward.4} parent=43 // loop_exit
                _
            $region44: #{_forward.4} parent=39 // pred_fallthru
              _
            // Predicated region
            $region52: #{_forward.4} parent=39 // pred_check
              _
            $region53: #{_forward.4} parent=39 // pred_check_branch
              %264 = sbr.rel target = $region55
            $region54: #{_forward.4} parent=39 // pred_region
              _
            $region55: #{_forward.4} parent=39 // pred_fallthru
              _
          $region40: #{_forward.4} parent=35 // pred_fallthru
            _
          %265 = vnop
        $region36: #{_forward.4} parent=31 // pred_fallthru
          _
      $region32: #{_forward.4} parent=5 // pred_fallthru
        _
      %p266 = scmp.le.s32.totalorder 1, %s14
      %p267 = scmp.lt.s32.totalorder %s14, 3
      %p268 = pnand %p266, %p267
      %p269 = pneg %p268
      // Predicated region
      $region56: #{_forward.4} parent=5 // pred_check
        _
      $region57: #{_forward.4} parent=5 // pred_check_branch
        %271 = sbr.rel (%p268) target = $region59
      $region58: #{_forward.4} parent=5 // pred_region
        %s272 = ssub.s32 %s14, 1
        %s273 = sand.u32 %s27, 1
        %s274 = sand.u32 %s27, 1
        %s275 = smul.addr %s274, 32
        %s276 = scalar_lea.vmem [#allocation3], %s275
        // Predicated region
        $region60: #{_forward.4} parent=58 // pred_check
          %p277 = pneg %p40
        $region61: #{_forward.4} parent=58 // pred_check_branch
          %279 = sbr.rel (%p277) target = $region63
        $region62: #{_forward.4} parent=58 // pred_region
          _
        $region63: #{_forward.4} parent=58 // pred_fallthru
          _
        %s280 = sand.u32 %s27, 1
        %s281 = sand.u32 %s27, 1
        %s282 = smul.addr %s281, 32
        %s283 = scalar_lea.vmem [#allocation3], %s282
        %p284 = pneg %p40
        %p285 = pneg %p37
        %p286 = pneg %p61
        %p287 = pneg %p58
        %p288 = pneg %p82
        %p289 = pneg %p79
        %p290 = pneg %p103
        %p291 = pneg %p100
        %p292 = pneg %p124
        %p293 = pneg %p121
        %p294 = pneg %p150
        %p295 = pneg %p147
        %s296 = sand.u32 %s137, 1
        %s297 = sand.u32 %s137, 1
        %s298 = smul.addr %s297, 32
        %s299 = scalar_lea.vmem [#allocation4], %s298
        %p300 = pneg %p176
        %p301 = pneg %p173
        %p302 = scmp.lt.s32.totalorder %s19, 1
        %s303 = scalar_select %p302, %s19, 1
        %s304 = smul.addr %s303, 2
        %s305 = smul.addr %s304, 8
        %s306 = scalar_lea.vmem %s6, %s305
        %p307 = pneg %p202
        %p308 = pneg %p199
        %p309 = scmp.lt.s32.totalorder %s19, 1
        %s310 = scalar_select %p309, %s19, 1
        %s311 = smul.addr %s310, 2
        %s312 = smul.addr %s311, 8
        %s313 = scalar_lea.vmem %s7, %s312
        %s314 = smul.u32 2, %s19
        %s315 = smul.u32 2, %s19
        %p316 = scmp.lt.s32.totalorder %s19, 1
        %s317 = scalar_select %p316, %s19, 1
        %s318 = smul.addr %s317, 2
        %s319 = smul.addr %s318, 8
        %s320 = scalar_lea.vmem %s6, %s319
        %p321 = scmp.lt.s32.totalorder %s19, 1
        %s322 = scalar_select %p321, %s19, 1
        %s323 = smul.addr %s322, 2
        %s324 = smul.addr %s323, 8
        %s325 = scalar_lea.vmem %s7, %s324
        %v327 = vld [vmem:[%s276] sm:$0xff]
        %v328 = vld [vmem:[%s276 + $0x8] sm:$0xff]
        %v329 = vld [vmem:[%s276 + $0x10] sm:$0xff]
        %v330 = vld [vmem:[%s276 + $0x18] sm:$0xff]
        %v331 = vld [vmem:[%s1] sm:$0xff]
        %v332 = vld [vmem:[%s1 + $0x8] sm:$0xff]
        %334 = vset.pattern.permute.xlu0 0
        %335 = vperm.xlu0 %334, %v331
        %v336 = vpop.permute.xlu0 %335
        %339 = vset.pattern.permute.xlu0 0
        %340 = vperm.xlu0 %339, %v332
        %v341 = vpop.permute.xlu0 %340
        %v343 = vmul.f32 %v327, %v336
        %v344 = vmul.f32 %v328, %v336
        %v345 = vmul.f32 %v329, %v341
        %v346 = vmul.f32 %v330, %v341
        %v347 = vld [vmem:[%s2] sm:$0xff]
        %v348 = vld [vmem:[%s2 + $0x8] sm:$0xff]
        %350 = vset.pattern.permute.xlu0 0
        %351 = vperm.xlu0 %350, %v347
        %v352 = vpop.permute.xlu0 %351
        %355 = vset.pattern.permute.xlu0 0
        %356 = vperm.xlu0 %355, %v348
        %v357 = vpop.permute.xlu0 %356
        %v359 = vadd.f32 %v343, %v352
        %v360 = vadd.f32 %v344, %v352
        %v361 = vadd.f32 %v345, %v357
        %v362 = vadd.f32 %v346, %v357
        %v363 = vmax.f32 %v359, 0.0
        %v364 = vmax.f32 %v360, 0.0
        %v365 = vmax.f32 %v361, 0.0
        %v366 = vmax.f32 %v362, 0.0
        %v367 = vpack.c.bf16 %v365, %v363
        %v368 = vpack.c.bf16 %v366, %v364
        %370 = vrot.lane.b32.xlu0 %v368, 17
        %v371 = vpop.permute.xlu0 %370
        %373 = vrot.lane.b32.xlu0 %v367, 17
        %v374 = vpop.permute.xlu0 %373
        %vm375 = vcmask 138240
        %v376 = vsel %vm375, %v374, %v371
        %vm378 = vcmask 138240
        %v381 = vsel %vm378, %v371, %v374
        %v383 = vld [vmem:[%s3] sm:$0x11]
        %v385 = vunpack.c.l.b16 %v383
        %v386 = vunpack.c.h.b16 %v383
        %v387 = vpack.c.b16 %v385, %v385
        %v388 = vpack.c.b16 %v386, %v386
        %v390 = vpack.i.b16 %v387, %v387
        %v392 = vlaneseq
        %v393 = vshrl.u32 %v392, 7
        %v394 = vsub.s32 0, %v393
        %v395 = vrot.slane %v390, %v394
        %v397 = vpack.i.b16 %v388, %v388
        %v399 = vlaneseq
        %v400 = vshrl.u32 %v399, 7
        %v401 = vsub.s32 0, %v400
        %v402 = vrot.slane %v397, %v401
        %v403 = vmul.bf16 %v381, %v395
        %v404 = vmul.bf16 %v376, %v402
        %405 = vst [vmem:[#allocation2] sm:$0xff] %v403
        %406 = vst [vmem:[#allocation2 + $0x8] sm:$0xff] %v404
        %407 = vrot.lane.b32.xlu0 %v368, 16
        %v408 = vpop.permute.xlu0 %407
        %409 = vrot.lane.b32.xlu0 %v367, 16
        %v410 = vpop.permute.xlu0 %409
        %vm411 = vcmask 130048
        %v412 = vsel %vm411, %v410, %v408
        %vm414 = vcmask 130048
        %v417 = vsel %vm414, %v408, %v410
        %v419 = vld [vmem:[%s3] sm:$0x11]
        %v421 = vunpack.c.l.b16 %v419
        %v422 = vunpack.c.h.b16 %v419
        %v423 = vpack.c.b16 %v421, %v421
        %v424 = vpack.c.b16 %v422, %v422
        %v426 = vshrl.u32 %v423, 16
        %v427 = vpack.i.b16 %v426, %v426
        %v429 = vlaneseq
        %v430 = vshrl.u32 %v429, 7
        %v431 = vsub.s32 0, %v430
        %v432 = vrot.slane %v427, %v431
        %v434 = vshrl.u32 %v424, 16
        %v435 = vpack.i.b16 %v434, %v434
        %v437 = vlaneseq
        %v438 = vshrl.u32 %v437, 7
        %v439 = vsub.s32 0, %v438
        %v440 = vrot.slane %v435, %v439
        %v441 = vmul.bf16 %v417, %v432
        %v442 = vmul.bf16 %v412, %v440
        %443 = vst [vmem:[#allocation2 + $0x10] sm:$0xff] %v441
        %444 = vst [vmem:[#allocation2 + $0x18] sm:$0xff] %v442
        %445 = vrot.lane.b32.xlu0 %v368, 15
        %v446 = vpop.permute.xlu0 %445
        %447 = vrot.lane.b32.xlu0 %v367, 15
        %v448 = vpop.permute.xlu0 %447
        %vm449 = vcmask 121856
        %v450 = vsel %vm449, %v448, %v446
        %vm452 = vcmask 121856
        %v455 = vsel %vm452, %v446, %v448
        %v457 = vld [vmem:[%s3] sm:$0x22]
        %v459 = vunpack.c.l.b16 %v457
        %v460 = vunpack.c.h.b16 %v457
        %v461 = vpack.c.b16 %v459, %v459
        %v462 = vpack.c.b16 %v460, %v460
        %v464 = vpack.i.b16 %v461, %v461
        %v466 = vlaneseq
        %v467 = vshrl.u32 %v466, 7
        %v468 = vsub.s32 1, %v467
        %v469 = vrot.slane %v464, %v468
        %v471 = vpack.i.b16 %v462, %v462
        %v473 = vlaneseq
        %v474 = vshrl.u32 %v473, 7
        %v475 = vsub.s32 1, %v474
        %v476 = vrot.slane %v471, %v475
        %v477 = vmul.bf16 %v455, %v469
        %v478 = vmul.bf16 %v450, %v476
        %479 = vst [vmem:[#allocation2 + $0x20] sm:$0xff] %v477
        %480 = vst [vmem:[#allocation2 + $0x28] sm:$0xff] %v478
        %481 = vrot.lane.b32.xlu0 %v368, 1
        %v482 = vpop.permute.xlu0 %481
        %483 = vrot.lane.b32.xlu0 %v367, 1
        %v484 = vpop.permute.xlu0 %483
        %vm485 = vcmask 7168
        %v486 = vsel %vm485, %v484, %v482
        %vm488 = vcmask 7168
        %v491 = vsel %vm488, %v482, %v484
        %v493 = vld [vmem:[%s3] sm:$0x22]
        %v495 = vunpack.c.l.b16 %v493
        %v496 = vunpack.c.h.b16 %v493
        %v497 = vpack.c.b16 %v495, %v495
        %v498 = vpack.c.b16 %v496, %v496
        %v500 = vshrl.u32 %v497, 16
        %v501 = vpack.i.b16 %v500, %v500
        %v503 = vlaneseq
        %v504 = vshrl.u32 %v503, 7
        %v505 = vsub.s32 1, %v504
        %v506 = vrot.slane %v501, %v505
        %v508 = vshrl.u32 %v498, 16
        %v509 = vpack.i.b16 %v508, %v508
        %v511 = vlaneseq
        %v512 = vshrl.u32 %v511, 7
        %v513 = vsub.s32 1, %v512
        %v514 = vrot.slane %v509, %v513
        %v515 = vmul.bf16 %v491, %v506
        %v516 = vmul.bf16 %v486, %v514
        %517 = vst [vmem:[#allocation2 + $0x30] sm:$0xff] %v515
        %518 = vst [vmem:[#allocation2 + $0x38] sm:$0xff] %v516
        %519 = vst [vmem:[#allocation2 + $0x40] sm:$0xff] %v367
        %520 = vst [vmem:[#allocation2 + $0x48] sm:$0xff] %v368
        %521 = vrot.lane.b32.xlu0 %v367, 127
        %v522 = vpop.permute.xlu0 %521
        %523 = vrot.lane.b32.xlu0 %v368, 127
        %v524 = vpop.permute.xlu0 %523
        %vm525 = vcmask 1039360
        %v526 = vsel %vm525, %v522, %v524
        %vm528 = vcmask 1039360
        %v531 = vsel %vm528, %v524, %v522
        %v533 = vld [vmem:[%s3] sm:$0x44]
        %v535 = vunpack.c.l.b16 %v533
        %v536 = vunpack.c.h.b16 %v533
        %v537 = vpack.c.b16 %v535, %v535
        %v538 = vpack.c.b16 %v536, %v536
        %v540 = vshrl.u32 %v537, 16
        %v541 = vpack.i.b16 %v540, %v540
        %v543 = vlaneseq
        %v544 = vshrl.u32 %v543, 7
        %v545 = vsub.s32 2, %v544
        %v546 = vrot.slane %v541, %v545
        %v548 = vshrl.u32 %v538, 16
        %v549 = vpack.i.b16 %v548, %v548
        %v551 = vlaneseq
        %v552 = vshrl.u32 %v551, 7
        %v553 = vsub.s32 2, %v552
        %v554 = vrot.slane %v549, %v553
        %v555 = vmul.bf16 %v526, %v546
        %v556 = vmul.bf16 %v531, %v554
        %557 = vst [vmem:[#allocation2 + $0x50] sm:$0xff] %v555
        %558 = vst [vmem:[#allocation2 + $0x58] sm:$0xff] %v556
        %559 = vrot.lane.b32.xlu0 %v367, 113
        %v560 = vpop.permute.xlu0 %559
        %561 = vrot.lane.b32.xlu0 %v368, 113
        %v562 = vpop.permute.xlu0 %561
        %vm563 = vcmask 924672
        %v564 = vsel %vm563, %v560, %v562
        %vm566 = vcmask 924672
        %v569 = vsel %vm566, %v562, %v560
        %v571 = vld [vmem:[%s3] sm:$0x88]
        %v573 = vunpack.c.l.b16 %v571
        %v574 = vunpack.c.h.b16 %v571
        %v575 = vpack.c.b16 %v573, %v573
        %v576 = vpack.c.b16 %v574, %v574
        %v578 = vpack.i.b16 %v575, %v575
        %v580 = vlaneseq
        %v581 = vshrl.u32 %v580, 7
        %v582 = vsub.s32 3, %v581
        %v583 = vrot.slane %v578, %v582
        %v585 = vpack.i.b16 %v576, %v576
        %v587 = vlaneseq
        %v588 = vshrl.u32 %v587, 7
        %v589 = vsub.s32 3, %v588
        %v590 = vrot.slane %v585, %v589
        %v591 = vmul.bf16 %v564, %v583
        %v592 = vmul.bf16 %v569, %v590
        %593 = vst [vmem:[#allocation2 + $0x60] sm:$0xff] %v591
        %594 = vst [vmem:[#allocation2 + $0x68] sm:$0xff] %v592
        %595 = vrot.lane.b32.xlu0 %v367, 112
        %v596 = vpop.permute.xlu0 %595
        %597 = vrot.lane.b32.xlu0 %v368, 112
        %v598 = vpop.permute.xlu0 %597
        %vm599 = vcmask 916480
        %v600 = vsel %vm599, %v596, %v598
        %vm602 = vcmask 916480
        %v605 = vsel %vm602, %v598, %v596
        %v607 = vld [vmem:[%s3] sm:$0x88]
        %v609 = vunpack.c.l.b16 %v607
        %v610 = vunpack.c.h.b16 %v607
        %v611 = vpack.c.b16 %v609, %v609
        %v612 = vpack.c.b16 %v610, %v610
        %v614 = vshrl.u32 %v611, 16
        %v615 = vpack.i.b16 %v614, %v614
        %v617 = vlaneseq
        %v618 = vshrl.u32 %v617, 7
        %v619 = vsub.s32 3, %v618
        %v620 = vrot.slane %v615, %v619
        %v622 = vshrl.u32 %v612, 16
        %v623 = vpack.i.b16 %v622, %v622
        %v625 = vlaneseq
        %v626 = vshrl.u32 %v625, 7
        %v627 = vsub.s32 3, %v626
        %v628 = vrot.slane %v623, %v627
        %v629 = vmul.bf16 %v600, %v620
        %v630 = vmul.bf16 %v605, %v628
        %631 = vst [vmem:[#allocation2 + $0x70] sm:$0xff] %v629
        %632 = vst [vmem:[#allocation2 + $0x78] sm:$0xff] %v630
        %633 = vrot.lane.b32.xlu0 %v367, 111
        %v634 = vpop.permute.xlu0 %633
        %635 = vrot.lane.b32.xlu0 %v368, 111
        %v636 = vpop.permute.xlu0 %635
        %vm637 = vcmask 908288
        %v638 = vsel %vm637, %v634, %v636
        %vm640 = vcmask 908288
        %v643 = vsel %vm640, %v636, %v634
        %v645 = vld [vmem:[%s3 + $0x8] sm:$0x11]
        %v647 = vunpack.c.l.b16 %v645
        %v648 = vunpack.c.h.b16 %v645
        %v649 = vpack.c.b16 %v647, %v647
        %v650 = vpack.c.b16 %v648, %v648
        %v652 = vpack.i.b16 %v649, %v649
        %v654 = vlaneseq
        %v655 = vshrl.u32 %v654, 7
        %v656 = vsub.s32 0, %v655
        %v657 = vrot.slane %v652, %v656
        %v659 = vpack.i.b16 %v650, %v650
        %v661 = vlaneseq
        %v662 = vshrl.u32 %v661, 7
        %v663 = vsub.s32 0, %v662
        %v664 = vrot.slane %v659, %v663
        %v665 = vmul.bf16 %v638, %v657
        %v666 = vmul.bf16 %v643, %v664
        %667 = vst [vmem:[#allocation2 + $0x80] sm:$0xff] %v665
        %668 = vst [vmem:[#allocation2 + $0x88] sm:$0xff] %v666
        %v669 = vld [vmem:[%s4] sm:$0xff]
        %v670 = vld [vmem:[%s4 + $0x8] sm:$0xff]
        %v671 = vld [vmem:[#allocation2] sm:$0xff]
        %v672 = vld [vmem:[#allocation2 + $0x8] sm:$0xff]
        %v673 = vld [vmem:[#allocation2 + $0x10] sm:$0xff]
        %v674 = vld [vmem:[#allocation2 + $0x18] sm:$0xff]
        %v675 = vld [vmem:[#allocation2 + $0x20] sm:$0xff]
        %v676 = vld [vmem:[#allocation2 + $0x28] sm:$0xff]
        %v677 = vld [vmem:[#allocation2 + $0x30] sm:$0xff]
        %v678 = vld [vmem:[#allocation2 + $0x38] sm:$0xff]
        %v679 = vld [vmem:[#allocation2 + $0x40] sm:$0xff]
        %v680 = vld [vmem:[#allocation2 + $0x48] sm:$0xff]
        %v681 = vld [vmem:[#allocation2 + $0x50] sm:$0xff]
        %v682 = vld [vmem:[#allocation2 + $0x58] sm:$0xff]
        %v683 = vld [vmem:[#allocation2 + $0x60] sm:$0xff]
        %v684 = vld [vmem:[#allocation2 + $0x68] sm:$0xff]
        %v685 = vld [vmem:[#allocation2 + $0x70] sm:$0xff]
        %v686 = vld [vmem:[#allocation2 + $0x78] sm:$0xff]
        %v687 = vld [vmem:[#allocation2 + $0x80] sm:$0xff]
        %v688 = vld [vmem:[#allocation2 + $0x88] sm:$0xff]
        %v691 = vunpack.c.l.b16 %v669
        %v692 = vunpack.c.h.b16 %v669
        %v693 = vunpack.c.l.b16 %v670
        %v694 = vunpack.c.h.b16 %v670
        %v695 = vpack.c.b16 %v693, %v691
        %v696 = vpack.c.b16 %v694, %v692
        %v699 = vsel %vm414, %v696, 0
        %701 = vmatprep.subr.bf16.mxu0 %v672
        %702 = vmatpush1.bf16.msra.mxu0 %v671
        %703 = vmatprep.subr.bf16.mxu0 %v674
        %704 = vmatpush1.bf16.msra.mxu0 %v673
        %705 = vmatprep.subr.bf16.mxu0 %v676
        %706 = vmatpush1.bf16.msra.mxu0 %v675
        %707 = vmatprep.subr.bf16.mxu0 %v678
        %708 = vmatpush1.bf16.msra.mxu0 %v677
        %709 = vmatprep.subr.bf16.mxu0 %v680
        %710 = vmatpush1.bf16.msra.mxu0 %v679
        %711 = vmatprep.subr.bf16.mxu0 %v682
        %712 = vmatpush1.bf16.msra.mxu0 %v681
        %713 = vmatprep.subr.bf16.mxu0 %v684
        %714 = vmatpush1.bf16.msra.mxu0 %v683
        %715 = vmatprep.subr.bf16.mxu0 %v686
        %716 = vmatpush1.bf16.msra.mxu0 %v685
        %717 = vmatprep.subr.bf16.mxu0 %v688
        %718 = vmatpush1.bf16.msra.mxu0 %v687
        %719 = vmatprep.subr.bf16.mxu0 0
        %720 = vmatpush1.bf16.msra.mxu0 0
        %721 = vmatprep.subr.bf16.mxu0 0
        %722 = vmatpush1.bf16.msra.mxu0 0
        %723 = vmatprep.subr.bf16.mxu0 0
        %724 = vmatpush1.bf16.msra.mxu0 0
        %725 = vmatprep.subr.bf16.mxu0 0
        %726 = vmatpush1.bf16.msra.mxu0 0
        %727 = vmatprep.subr.bf16.mxu0 0
        %728 = vmatpush1.bf16.msra.mxu0 0
        %729 = vmatprep.subr.bf16.mxu0 0
        %730 = vmatpush1.bf16.msra.mxu0 0
        %731 = vmatprep.subr.bf16.mxu0 0
        %732 = vmatpush1.bf16.msra.mxu0 0
        %733 = vmatprep.mubr.bf16.mxu0 %v699
        %734 = vmatmul.mubr.bf16.gmra.mrb[0].mxu0 %v695
        %v735 = vpop.f32.mrb[0].mxu0
        %v736 = vadd.f32 0.0, %v735
        %v737 = vpop.f32.mrb[0].mxu0
        %v738 = vadd.f32 0.0, %v737
        %v739 = vpop.f32.mrb[0].mxu0
        %v740 = vadd.f32 0.0, %v739
        %v741 = vpop.f32.mrb[0].mxu0
        %v742 = vadd.f32 0.0, %v741
        %743 = vdwg.mxu0
        %744 = vst [vmem:[%s299] sm:$0xff] %v736
        %745 = vst [vmem:[%s299 + $0x8] sm:$0xff] %v738
        %746 = vst [vmem:[%s299 + $0x10] sm:$0xff] %v740
        %747 = vst [vmem:[%s299 + $0x18] sm:$0xff] %v742
        %v748 = vadd.f32 %v736, %v738
        %749 = vadd.xlane.f32.xlu0 %v748
        %v750 = vpop.xlane.xlu0 %749
        %v751 = vadd.f32 %v740, %v742
        %752 = vadd.xlane.f32.xlu0 %v751
        %v753 = vpop.xlane.xlu0 %752
        %754 = vst.msk [vmem:[%s320] sm:$0xff] %vm488, %v750
        %755 = vst.msk [vmem:[%s320 + $0x8] sm:$0xff] %vm488, %v753
        %v756 = vmul.f32 %v736, %v736
        %v757 = vmul.f32 %v738, %v738
        %v758 = vmul.f32 %v740, %v740
        %v759 = vmul.f32 %v742, %v742
        %v760 = vadd.f32 %v756, %v757
        %761 = vadd.xlane.f32.xlu0 %v760
        %v762 = vpop.xlane.xlu0 %761
        %v763 = vadd.f32 %v758, %v759
        %764 = vadd.xlane.f32.xlu0 %v763
        %v765 = vpop.xlane.xlu0 %764
        %766 = vst.msk [vmem:[%s325] sm:$0xff] %vm488, %v762
        %767 = vst.msk [vmem:[%s325 + $0x8] sm:$0xff] %vm488, %v765
        %s768 = sand.u32 %s137, 1
        %s769 = sand.u32 %s137, 1
        %s770 = smul.addr %s769, 32
        %s771 = scalar_lea.vmem [#allocation4], %s770
        %p772 = scmp.lt.s32.totalorder %s19, 1
        %s773 = scalar_select %p772, %s19, 1
        %s774 = smul.addr %s773, 2
        %s775 = smul.addr %s774, 8
        %s776 = scalar_lea.vmem %s6, %s775
        %p777 = scmp.lt.s32.totalorder %s19, 1
        %s778 = scalar_select %p777, %s19, 1
        %s779 = smul.addr %s778, 2
        %s780 = smul.addr %s779, 8
        %s781 = scalar_lea.vmem %s7, %s780
        // Predicated region
        $region64: #{_forward.4} parent=58 // pred_check
          %p782 = pneg %p147
        $region65: #{_forward.4} parent=58 // pred_check_branch
          %784 = sbr.rel (%p782) target = $region67
        $region66: #{_forward.4} parent=58 // pred_region
          %s785 = smul.u32 2, %s19
          %s786 = smul.addr %s785, 8
          %s787 = scalar_lea.vmem %s5, %s786
          // Predicated region
          $region68: #{_forward.4} parent=66 // pred_check
            _
          $region69: #{_forward.4} parent=66 // pred_check_branch
            %789 = sbr.rel (0) target = $region71
          $region70: #{_forward.4} parent=66 // pred_region
            // Predicated region
            $region72: #{_forward.4} parent=70 // pred_check
              _
            $region73: #{_forward.4} parent=70 // pred_check_branch
              %791 = sbr.rel (0) target = $region75
            $region74: #{_forward.4} parent=70 // pred_region
              loop: start=0, step=1, limit=1
              $region76: #{_forward.4} parent=74 // loop_pre_header
                _
              $region77: #{_forward.4} parent=74 // loop_header
                %s793 = sphi 0, %s797
                %p794 = scmp.ge.s32.totalorder %s793, 1
                %s798 = sphi %s771, %s771
                %s799 = sphi %s787, %s787
              $region78: #{_forward.4} parent=74 // loop_header_branch
                %796 = sbr.rel (%p794) target = $region82
              $region79: #{_forward.4} parent=74 // loop_body
                %v800 = vld [vmem:[%s798] sm:$0xff]
                %801 = vst [vmem:[%s799] sm:$0xff] %v800
                %v802 = vld [vmem:[%s798 + $0x8] sm:$0xff]
                %803 = vst [vmem:[%s799 + $0x8] sm:$0xff] %v802
                %v804 = vld [vmem:[%s798 + $0x10] sm:$0xff]
                %805 = vst [vmem:[%s799 + $0x20] sm:$0xff] %v804
                %v806 = vld [vmem:[%s798 + $0x18] sm:$0xff]
                %807 = vst [vmem:[%s799 + $0x28] sm:$0xff] %v806
              $region80: #{_forward.4} parent=74 // loop_footer
                %s797 = sadd.s32 1, %s793
              $region81: #{_forward.4} parent=74 // loop_footer_branch
                %792 = sbr.rel target = $region77
              $region82: #{_forward.4} parent=74 // loop_exit
                _
            $region75: #{_forward.4} parent=70 // pred_fallthru
              _
            // Predicated region
            $region83: #{_forward.4} parent=70 // pred_check
              _
            $region84: #{_forward.4} parent=70 // pred_check_branch
              %809 = sbr.rel target = $region86
            $region85: #{_forward.4} parent=70 // pred_region
              _
            $region86: #{_forward.4} parent=70 // pred_fallthru
              _
          $region71: #{_forward.4} parent=66 // pred_fallthru
            _
          %810 = vnop
        $region67: #{_forward.4} parent=58 // pred_fallthru
          _
        // Predicated region
        $region87: #{_forward.4} parent=58 // pred_check
          %p811 = pneg %p173
        $region88: #{_forward.4} parent=58 // pred_check_branch
          %813 = sbr.rel (%p811) target = $region90
        $region89: #{_forward.4} parent=58 // pred_region
          _
        $region90: #{_forward.4} parent=58 // pred_fallthru
          _
        // Predicated region
        $region91: #{_forward.4} parent=58 // pred_check
          %p814 = pneg %p199
        $region92: #{_forward.4} parent=58 // pred_check_branch
          %816 = sbr.rel (%p814) target = $region94
        $region93: #{_forward.4} parent=58 // pred_region
          _
        $region94: #{_forward.4} parent=58 // pred_fallthru
          _
      $region59: #{_forward.4} parent=5 // pred_fallthru
        _
      %p817 = scmp.le.s32.totalorder 2, %s14
      // Predicated region
      $region95: #{_forward.4} parent=5 // pred_check
        %p818 = pneg %p817
      $region96: #{_forward.4} parent=5 // pred_check_branch
        %820 = sbr.rel (%p818) target = $region98
      $region97: #{_forward.4} parent=5 // pred_region
        %s821 = ssub.s32 %s14, 2
        // Predicated region
        $region99: #{_forward.4} parent=97 // pred_check
          %p822 = pneg %p153
        $region100: #{_forward.4} parent=97 // pred_check_branch
          %824 = sbr.rel (%p822) target = $region102
        $region101: #{_forward.4} parent=97 // pred_region
          %s825 = sand.u32 %s138, 1
          %s826 = sand.u32 %s138, 1
          %s827 = smul.addr %s826, 32
          %s828 = scalar_lea.vmem [#allocation4], %s827
        $region102: #{_forward.4} parent=97 // pred_fallthru
          _
        // Predicated region
        $region103: #{_forward.4} parent=97 // pred_check
          %p829 = pneg %p179
        $region104: #{_forward.4} parent=97 // pred_check_branch
          %831 = sbr.rel (%p829) target = $region106
        $region105: #{_forward.4} parent=97 // pred_region
          %p832 = scmp.lt.s32.totalorder %s20, 1
          %s833 = scalar_select %p832, %s20, 1
          %s834 = smul.addr %s833, 2
          %s835 = smul.addr %s834, 8
          %s836 = scalar_lea.vmem %s6, %s835
        $region106: #{_forward.4} parent=97 // pred_fallthru
          _
        // Predicated region
        $region107: #{_forward.4} parent=97 // pred_check
          %p837 = pneg %p205
        $region108: #{_forward.4} parent=97 // pred_check_branch
          %839 = sbr.rel (%p837) target = $region110
        $region109: #{_forward.4} parent=97 // pred_region
          %p840 = scmp.lt.s32.totalorder %s20, 1
          %s841 = scalar_select %p840, %s20, 1
          %s842 = smul.addr %s841, 2
          %s843 = smul.addr %s842, 8
          %s844 = scalar_lea.vmem %s7, %s843
        $region110: #{_forward.4} parent=97 // pred_fallthru
          _
      $region98: #{_forward.4} parent=5 // pred_fallthru
        _
    $region6: #{_forward.4} parent=1 // loop_footer
      %s18 = sadd.s32 1, %s14
    $region7: #{_forward.4} parent=1 // loop_footer_branch
      %13 = sbr.rel target = $region3
    $region8: #{_forward.4} parent=1 // loop_exit
      _

</llo_original>
